<compile_context>
chip_gen: v5e
topology: v5e:2x2
jax: 0.10.0
libtpu: 0.0.40
codegen_flags: <defaults>
</compile_context>

<pallas_src>
import functools
import math

import jax
import jax.numpy as jnp
from jax.experimental import pallas as pl
from jax.experimental.pallas import tpu as pltpu


# ---------------------------------------------------------------------------
# Kernel 1: one (batch, head) pair per grid step: QKV projection for that head,
#           scaled-dot-product attention, post-softmax mask fill, context.
# ---------------------------------------------------------------------------
def _mha_head_kernel(x_ref, mask_ref,
                     wq_ref, bq_ref, wk_ref, bk_ref, wv_ref, bv_ref,
                     ctx_ref, attn_ref, *, inv_sqrt_d):
    x = x_ref[0]                              # (S, D) bf16

    # Per-head projections: contracting dim = D (>=128), bf16 MXU, f32 accumulate.
    q = jnp.dot(x, wq_ref[0], preferred_element_type=jnp.float32) + bq_ref[0]   # (S, hd)
    k = jnp.dot(x, wk_ref[0], preferred_element_type=jnp.float32) + bk_ref[0]   # (S, hd)
    v = jnp.dot(x, wv_ref[0], preferred_element_type=jnp.float32) + bv_ref[0]   # (S, hd)

    # Scores (S, S): q @ k^T as an NT dot_general (no explicit transpose op).
    s = jax.lax.dot_general(
        q.astype(jnp.bfloat16), k.astype(jnp.bfloat16),
        (((1,), (1,)), ((), ())),
        preferred_element_type=jnp.float32) * inv_sqrt_d

    # Softmax in f32 (reciprocal goes to the EUP slot).
    s_max = jnp.max(s, axis=-1, keepdims=True)
    e = jnp.exp(s - s_max)
    p = e * pl.reciprocal(jnp.sum(e, axis=-1, keepdims=True), approx=True)

    # Reference semantics: masked_fill AFTER softmax, no renormalization.
    p = jnp.where(mask_ref[0] == 0, jnp.float32(1e-9), p)

    attn_ref[0, 0] = p.astype(attn_ref.dtype)
    ctx_ref[0, 0] = jnp.dot(p.astype(jnp.bfloat16), v.astype(jnp.bfloat16),
                            preferred_element_type=jnp.float32).astype(ctx_ref.dtype)


# ---------------------------------------------------------------------------
# Kernel 2: residual + LayerNorm + FFN + residual, one batch element per step.
# ---------------------------------------------------------------------------
def _ln_ffn_kernel(xattn_ref, x_ref, gamma_ref, beta_ref,
                   w1_ref, b1_ref, w2_ref, b2_ref, out_ref):
    # residual + LayerNorm (f32)
    h1 = xattn_ref[0] + x_ref[0]                           # (S, D)
    mean = jnp.mean(h1, axis=-1, keepdims=True)
    cent = h1 - mean
    var = jnp.mean(cent * cent, axis=-1, keepdims=True)
    xn = cent * jax.lax.rsqrt(var + 1e-5)
    xn = xn * gamma_ref[...] + beta_ref[...]               # (S, D)

    # FFN: relu(xn @ W1 + b1) @ W2 + b2 -- bf16 MXU inputs, f32 accumulation.
    f = jnp.dot(xn.astype(jnp.bfloat16), w1_ref[...],
                preferred_element_type=jnp.float32) + b1_ref[...]
    f = jnp.maximum(f, 0.0)
    f = jnp.dot(f.astype(jnp.bfloat16), w2_ref[...],
                preferred_element_type=jnp.float32) + b2_ref[...]

    out_ref[0] = (f + xn).astype(out_ref.dtype)


# ---------------------------------------------------------------------------
# Wrapper
# ---------------------------------------------------------------------------
def encoder_forward(x, mask, params, *, num_heads, attn_dtype=jnp.float32):
    """x: (B, S, D) f32, mask: (B, S, S) (1=keep, 0=masked; broadcast over heads).

    Returns (out (B, S, D), attn_map (B, H, S, S)).
    Set attn_dtype=jnp.bfloat16 to halve the attention-map HBM writeback.
    """
    B, S, D = x.shape
    assert D % num_heads == 0
    hd = D // num_heads
    dff = params["w1"].shape[1]
    inv_sqrt_d = 1.0 / math.sqrt(float(D))     # reference scales by full d_model

    # ---- one-time wrapper-side layout plumbing (outside the kernels) ----
    # Per-head weight slabs (H, D, hd) so the kernel never slices lanes;
    # bf16 weights halve DMA bytes and hit the native MXU path.
    def to_heads_w(w):
        return jnp.transpose(w.reshape(D, num_heads, hd), (1, 0, 2)).astype(jnp.bfloat16)

    def to_heads_b(b):
        return jnp.transpose(b.reshape(1, num_heads, hd), (1, 0, 2))   # (H, 1, hd) f32

    wq_h, wk_h, wv_h = (to_heads_w(params[n]) for n in ("wq", "wk", "wv"))
    bq_h, bk_h, bv_h = (to_heads_b(params[n]) for n in ("bq", "bk", "bv"))
    x_bf16 = x.astype(jnp.bfloat16)

    w_spec = pl.BlockSpec((1, D, hd), lambda b, h: (h, 0, 0))
    b_spec = pl.BlockSpec((1, 1, hd), lambda b, h: (h, 0, 0))

    ctx, attn_map = pl.pallas_call(
        functools.partial(_mha_head_kernel, inv_sqrt_d=inv_sqrt_d),
        out_shape=(
            jax.ShapeDtypeStruct((B, num_heads, S, hd), jnp.float32),   # per-head ctx
            jax.ShapeDtypeStruct((B, num_heads, S, S), attn_dtype),     # attn map
        ),
        grid_spec=pltpu.PrefetchScalarGridSpec(
            num_scalar_prefetch=0,
            grid=(B, num_heads),
            in_specs=[
                pl.BlockSpec((1, S, D), lambda b, h: (b, 0, 0)),   # x (bf16)
                pl.BlockSpec((1, S, S), lambda b, h: (b, 0, 0)),   # mask
                w_spec, b_spec,                                    # Wq, bq (per head)
                w_spec, b_spec,                                    # Wk, bk
                w_spec, b_spec,                                    # Wv, bv
            ],
            out_specs=[
                pl.BlockSpec((1, 1, S, hd), lambda b, h: (b, h, 0, 0)),
                pl.BlockSpec((1, 1, S, S), lambda b, h: (b, h, 0, 0)),
            ],
        ),
        compiler_params=pltpu.CompilerParams(
            dimension_semantics=("parallel", "parallel")),
    )(x_bf16, mask, wq_h, bq_h, wk_h, bk_h, wv_h, bv_h)

    # merge_heads: (B, H, S, hd) -> (B, S, H*hd).  Pure layout plumbing (XLA).
    attn_out = jnp.transpose(ctx, (0, 2, 1, 3)).reshape(B, S, D)

    out = pl.pallas_call(
        _ln_ffn_kernel,
        out_shape=jax.ShapeDtypeStruct((B, S, D), x.dtype),
        grid_spec=pltpu.PrefetchScalarGridSpec(
            num_scalar_prefetch=0,
            grid=(B,),
            in_specs=[
                pl.BlockSpec((1, S, D), lambda b: (b, 0, 0)),   # attn output (f32)
                pl.BlockSpec((1, S, D), lambda b: (b, 0, 0)),   # x (f32, residual)
                pl.BlockSpec((1, D), lambda b: (0, 0)),          # gamma
                pl.BlockSpec((1, D), lambda b: (0, 0)),          # beta
                pl.BlockSpec((D, dff), lambda b: (0, 0)),        # W1 (bf16)
                pl.BlockSpec((1, dff), lambda b: (0, 0)),        # b1
                pl.BlockSpec((dff, D), lambda b: (0, 0)),        # W2 (bf16)
                pl.BlockSpec((1, D), lambda b: (0, 0)),          # b2
            ],
            out_specs=pl.BlockSpec((1, S, D), lambda b: (b, 0, 0)),
        ),
        compiler_params=pltpu.CompilerParams(
            dimension_semantics=("parallel",)),
    )(attn_out, x,
      params["gamma"], params["beta"],
      params["w1"].astype(jnp.bfloat16), params["b1"],
      params["w2"].astype(jnp.bfloat16), params["b2"])

    return out, attn_map


def init_params(key, d_model, dff):
    """Deterministic param init. Linear weights stored as (in, out), i.e. already
    transposed relative to torch's (out, in), so the kernel does x @ W."""
    ks = jax.random.split(key, 7)
    scale_d = 1.0 / math.sqrt(d_model)
    scale_f = 1.0 / math.sqrt(dff)
    return {
        "wq": jax.random.normal(ks[0], (d_model, d_model), jnp.float32) * scale_d,
        "bq": jnp.zeros((1, d_model), jnp.float32),
        "wk": jax.random.normal(ks[1], (d_model, d_model), jnp.float32) * scale_d,
        "bk": jnp.zeros((1, d_model), jnp.float32),
        "wv": jax.random.normal(ks[2], (d_model, d_model), jnp.float32) * scale_d,
        "bv": jnp.zeros((1, d_model), jnp.float32),
        "gamma": jnp.ones((1, d_model), jnp.float32),
        "beta": jnp.zeros((1, d_model), jnp.float32),
        "w1": jax.random.normal(ks[3], (d_model, dff), jnp.float32) * scale_d,
        "b1": jax.random.normal(ks[4], (1, dff), jnp.float32) * 0.01,
        "w2": jax.random.normal(ks[5], (dff, d_model), jnp.float32) * scale_f,
        "b2": jax.random.normal(ks[6], (1, d_model), jnp.float32) * 0.01,
    }


def _reference_forward(x, mask, params, *, num_heads):
    """Pure-JAX f32 mirror of the PyTorch module (eval mode)."""
    B, S, D = x.shape
    hd = D // num_heads

    def proj(w, b):
        return jnp.einsum("bsd,de->bse", x, w) + b

    split = lambda t: t.reshape(B, S, num_heads, hd).transpose(0, 2, 1, 3)
    q, k, v = (split(proj(params[w], params[b]))
               for w, b in (("wq", "bq"), ("wk", "bk"), ("wv", "bv")))
    s = jnp.einsum("bhqe,bhke->bhqk", q, k) / math.sqrt(D)
    p = jax.nn.softmax(s, axis=-1)
    p = jnp.where(mask[:, None, :, :] == 0, 1e-9, p)      # post-softmax fill
    ctx = jnp.einsum("bhqk,bhke->bhqe", p, v)
    attn_out = ctx.transpose(0, 2, 1, 3).reshape(B, S, D)

    h1 = attn_out + x
    mean = h1.mean(-1, keepdims=True)
    var = ((h1 - mean) ** 2).mean(-1, keepdims=True)
    xn = (h1 - mean) * jax.lax.rsqrt(var + 1e-5) * params["gamma"] + params["beta"]
    f = jnp.maximum(xn @ params["w1"] + params["b1"], 0.0)
    f = f @ params["w2"] + params["b2"]
    return f + xn, p


if __name__ == "__main__":
    # Small shapes consistent with the module's (B, S, D) forward.
    # S = 128 keeps the attention-map stores lane-dense.
    B, S, D, H, DFF = 2, 128, 128, 4, 256

    key = jax.random.PRNGKey(0)
    kx, kp = jax.random.split(key)
    x = jax.random.normal(kx, (B, S, D), jnp.float32)

    # Mask: 1 = keep, 0 = masked (post-softmax fill with 1e-9). Causal mask.
    causal = jnp.tril(jnp.ones((S, S), jnp.float32))
    mask = jnp.broadcast_to(causal, (B, S, S))

    params = init_params(kp, D, DFF)

    out, attn_map = encoder_forward(x, mask, params, num_heads=H)
    jax.block_until_ready((out, attn_map))

    assert out.shape == (B, S, D)
    assert attn_map.shape == (B, H, S, S)

    # Loose-tolerance check vs. pure-JAX reference (bf16 MXU inputs, f32 accum).
    out_ref, attn_ref = _reference_forward(x, mask, params, num_heads=H)
    out_err = float(jnp.max(jnp.abs(out - out_ref)))
    attn_err = float(jnp.max(jnp.abs(attn_map.astype(jnp.float32) - attn_ref)))
    assert out_err < 0.2, f"out mismatch: {out_err}"
    assert attn_err < 0.1, f"attn mismatch: {attn_err}"

    print("KERNEL_OK")
</pallas_src>

<mosaic_0001>
module attributes {stable_mosaic.version = 11 : i64} {
  func.func @_mha_head_kernel(%arg0: i32, %arg1: i32, %arg2: memref<1x128x128xbf16, #tpu.memory_space<vmem>>, %arg3: memref<1x128x128xf32, #tpu.memory_space<vmem>>, %arg4: memref<1x128x32xbf16, #tpu.memory_space<vmem>>, %arg5: memref<1x1x32xf32, #tpu.memory_space<vmem>>, %arg6: memref<1x128x32xbf16, #tpu.memory_space<vmem>>, %arg7: memref<1x1x32xf32, #tpu.memory_space<vmem>>, %arg8: memref<1x128x32xbf16, #tpu.memory_space<vmem>>, %arg9: memref<1x1x32xf32, #tpu.memory_space<vmem>>, %arg10: memref<1x1x128x32xf32, #tpu.memory_space<vmem>>, %arg11: memref<1x1x128x128xf32, #tpu.memory_space<vmem>>) attributes {dimension_semantics = [#tpu.dimension_semantics<parallel>, #tpu.dimension_semantics<parallel>], iteration_bounds = array<i64: 2, 4>, scalar_prefetch = 0 : i64, scratch_operands = 0 : i64, tpu.core_type = #tpu.core_type<tc>, window_params = [{transform_indices = @transform_0, window_bounds = array<i64: 1, 128, 128>}, {transform_indices = @transform_1, window_bounds = array<i64: 1, 128, 128>}, {transform_indices = @transform_2, window_bounds = array<i64: 1, 128, 32>}, {transform_indices = @transform_3, window_bounds = array<i64: 1, 1, 32>}, {transform_indices = @transform_4, window_bounds = array<i64: 1, 128, 32>}, {transform_indices = @transform_5, window_bounds = array<i64: 1, 1, 32>}, {transform_indices = @transform_6, window_bounds = array<i64: 1, 128, 32>}, {transform_indices = @transform_7, window_bounds = array<i64: 1, 1, 32>}, {transform_indices = @transform_8, window_bounds = array<i64: 1, 1, 128, 32>}, {transform_indices = @transform_9, window_bounds = array<i64: 1, 1, 128, 128>}]} {
    %c0 = arith.constant 0 : index
    %c0_0 = arith.constant 0 : index
    %c0_1 = arith.constant 0 : index
    %0 = vector.load %arg2[%c0, %c0_0, %c0_1] : memref<1x128x128xbf16, #tpu.memory_space<vmem>>, vector<1x128x128xbf16>
    %1 = vector.shape_cast %0 : vector<1x128x128xbf16> to vector<128x128xbf16>
    %c0_2 = arith.constant 0 : index
    %c0_3 = arith.constant 0 : index
    %c0_4 = arith.constant 0 : index
    %2 = vector.load %arg4[%c0_2, %c0_3, %c0_4] : memref<1x128x32xbf16, #tpu.memory_space<vmem>>, vector<1x128x32xbf16>
    %3 = vector.shape_cast %2 : vector<1x128x32xbf16> to vector<128x32xbf16>
    %cst = arith.constant dense<0.000000e+00> : vector<128x32xf32>
    %4 = tpu.matmul %1, %3, %cst {dimension_numbers = #tpu.dot_dimension_numbers<[1], [0], [0], [1], [0, 0, 1, 1], [], []>} : vector<128x128xbf16>, vector<128x32xbf16>, vector<128x32xf32> -> vector<128x32xf32>
    %c0_5 = arith.constant 0 : index
    %c0_6 = arith.constant 0 : index
    %c0_7 = arith.constant 0 : index
    %5 = vector.load %arg5[%c0_5, %c0_6, %c0_7] : memref<1x1x32xf32, #tpu.memory_space<vmem>>, vector<1x1x32xf32>
    %6 = vector.shape_cast %5 : vector<1x1x32xf32> to vector<1x32xf32>
    %7 = vector.broadcast %6 : vector<1x32xf32> to vector<128x32xf32>
    %8 = arith.addf %4, %7 : vector<128x32xf32>
    %c0_8 = arith.constant 0 : index
    %c0_9 = arith.constant 0 : index
    %c0_10 = arith.constant 0 : index
    %9 = vector.load %arg6[%c0_8, %c0_9, %c0_10] : memref<1x128x32xbf16, #tpu.memory_space<vmem>>, vector<1x128x32xbf16>
    %10 = vector.shape_cast %9 : vector<1x128x32xbf16> to vector<128x32xbf16>
    %cst_11 = arith.constant dense<0.000000e+00> : vector<128x32xf32>
    %11 = tpu.matmul %1, %10, %cst_11 {dimension_numbers = #tpu.dot_dimension_numbers<[1], [0], [0], [1], [0, 0, 1, 1], [], []>} : vector<128x128xbf16>, vector<128x32xbf16>, vector<128x32xf32> -> vector<128x32xf32>
    %c0_12 = arith.constant 0 : index
    %c0_13 = arith.constant 0 : index
    %c0_14 = arith.constant 0 : index
    %12 = vector.load %arg7[%c0_12, %c0_13, %c0_14] : memref<1x1x32xf32, #tpu.memory_space<vmem>>, vector<1x1x32xf32>
    %13 = vector.shape_cast %12 : vector<1x1x32xf32> to vector<1x32xf32>
    %14 = vector.broadcast %13 : vector<1x32xf32> to vector<128x32xf32>
    %15 = arith.addf %11, %14 : vector<128x32xf32>
    %c0_15 = arith.constant 0 : index
    %c0_16 = arith.constant 0 : index
    %c0_17 = arith.constant 0 : index
    %16 = vector.load %arg8[%c0_15, %c0_16, %c0_17] : memref<1x128x32xbf16, #tpu.memory_space<vmem>>, vector<1x128x32xbf16>
    %17 = vector.shape_cast %16 : vector<1x128x32xbf16> to vector<128x32xbf16>
    %cst_18 = arith.constant dense<0.000000e+00> : vector<128x32xf32>
    %18 = tpu.matmul %1, %17, %cst_18 {dimension_numbers = #tpu.dot_dimension_numbers<[1], [0], [0], [1], [0, 0, 1, 1], [], []>} : vector<128x128xbf16>, vector<128x32xbf16>, vector<128x32xf32> -> vector<128x32xf32>
    %c0_19 = arith.constant 0 : index
    %c0_20 = arith.constant 0 : index
    %c0_21 = arith.constant 0 : index
    %19 = vector.load %arg9[%c0_19, %c0_20, %c0_21] : memref<1x1x32xf32, #tpu.memory_space<vmem>>, vector<1x1x32xf32>
    %20 = vector.shape_cast %19 : vector<1x1x32xf32> to vector<1x32xf32>
    %21 = vector.broadcast %20 : vector<1x32xf32> to vector<128x32xf32>
    %22 = arith.addf %18, %21 : vector<128x32xf32>
    %23 = arith.truncf %8 : vector<128x32xf32> to vector<128x32xbf16>
    %24 = arith.truncf %15 : vector<128x32xf32> to vector<128x32xbf16>
    %cst_22 = arith.constant dense<0.000000e+00> : vector<128x128xf32>
    %25 = tpu.matmul %23, %24, %cst_22 {dimension_numbers = #tpu.dot_dimension_numbers<[1], [1], [0], [0], [0, 0, 1, 0], [], []>} : vector<128x32xbf16>, vector<128x32xbf16>, vector<128x128xf32> -> vector<128x128xf32>
    %cst_23 = arith.constant 0.0883883461 : f32
    %26 = vector.broadcast %cst_23 : f32 to vector<128x128xf32>
    %27 = arith.mulf %25, %26 : vector<128x128xf32>
    %cst_24 = arith.constant dense<0xFF800000> : vector<128xf32>
    %28 = vector.multi_reduction <maximumf>, %27, %cst_24 [1] : vector<128x128xf32> to vector<128xf32>
    %29 = vector.shape_cast %28 : vector<128xf32> to vector<128x1xf32>
    %30 = vector.broadcast %29 : vector<128x1xf32> to vector<128x128xf32>
    %31 = arith.subf %27, %30 : vector<128x128xf32>
    %32 = math.exp %31 : vector<128x128xf32>
    %cst_25 = arith.constant dense<0.000000e+00> : vector<128xf32>
    %33 = vector.multi_reduction <add>, %32, %cst_25 [1] : vector<128x128xf32> to vector<128xf32>
    %34 = vector.shape_cast %33 : vector<128xf32> to vector<128x1xf32>
    %35 = tpu.reciprocal %34 {approx = true} : vector<128x1xf32> -> vector<128x1xf32>
    %36 = vector.broadcast %35 : vector<128x1xf32> to vector<128x128xf32>
    %37 = arith.mulf %32, %36 : vector<128x128xf32>
    %c0_26 = arith.constant 0 : index
    %c0_27 = arith.constant 0 : index
    %c0_28 = arith.constant 0 : index
    %38 = vector.load %arg3[%c0_26, %c0_27, %c0_28] : memref<1x128x128xf32, #tpu.memory_space<vmem>>, vector<1x128x128xf32>
    %39 = vector.shape_cast %38 : vector<1x128x128xf32> to vector<128x128xf32>
    %cst_29 = arith.constant 0.000000e+00 : f32
    %40 = vector.broadcast %cst_29 : f32 to vector<128x128xf32>
    %41 = arith.cmpf oeq, %39, %40 : vector<128x128xf32>
    %cst_30 = arith.constant 9.99999971E-10 : f32
    %42 = vector.broadcast %cst_30 : f32 to vector<128x128xf32>
    %43 = arith.select %41, %42, %37 : vector<128x128xi1>, vector<128x128xf32>
    %c0_31 = arith.constant 0 : index
    %c0_32 = arith.constant 0 : index
    %c0_33 = arith.constant 0 : index
    %c0_34 = arith.constant 0 : index
    %44 = vector.load %arg11[%c0_31, %c0_32, %c0_33, %c0_34] : memref<1x1x128x128xf32, #tpu.memory_space<vmem>>, vector<1x1x128x128xf32>
    %45 = vector.shape_cast %44 : vector<1x1x128x128xf32> to vector<128x128xf32>
    %46 = vector.shape_cast %43 : vector<128x128xf32> to vector<1x1x128x128xf32>
    tpu.vector_store %arg11[%c0_31, %c0_32, %c0_33, %c0_34], %46 {strides = array<i32>} : memref<1x1x128x128xf32, #tpu.memory_space<vmem>>, vector<1x1x128x128xf32>,
    %47 = arith.truncf %43 : vector<128x128xf32> to vector<128x128xbf16>
    %48 = arith.truncf %22 : vector<128x32xf32> to vector<128x32xbf16>
    %cst_35 = arith.constant dense<0.000000e+00> : vector<128x32xf32>
    %49 = tpu.matmul %47, %48, %cst_35 {dimension_numbers = #tpu.dot_dimension_numbers<[1], [0], [0], [1], [0, 0, 1, 1], [], []>} : vector<128x128xbf16>, vector<128x32xbf16>, vector<128x32xf32> -> vector<128x32xf32>
    %c0_36 = arith.constant 0 : index
    %c0_37 = arith.constant 0 : index
    %c0_38 = arith.constant 0 : index
    %c0_39 = arith.constant 0 : index
    %50 = vector.load %arg10[%c0_36, %c0_37, %c0_38, %c0_39] : memref<1x1x128x32xf32, #tpu.memory_space<vmem>>, vector<1x1x128x32xf32>
    %51 = vector.shape_cast %50 : vector<1x1x128x32xf32> to vector<128x32xf32>
    %52 = vector.shape_cast %49 : vector<128x32xf32> to vector<1x1x128x32xf32>
    tpu.vector_store %arg10[%c0_36, %c0_37, %c0_38, %c0_39], %52 {strides = array<i32>} : memref<1x1x128x32xf32, #tpu.memory_space<vmem>>, vector<1x1x128x32xf32>,
    return
  }
  func.func @transform_0(%arg0: i32, %arg1: i32) -> (i32, i32, i32) {
    %c0_i32 = arith.constant 0 : i32
    %c0_i32_0 = arith.constant 0 : i32
    %c0_i32_1 = arith.constant 0 : i32
    return %arg0, %c0_i32, %c0_i32_0 : i32, i32, i32
  }
  func.func @transform_1(%arg0: i32, %arg1: i32) -> (i32, i32, i32) {
    %c0_i32 = arith.constant 0 : i32
    %c0_i32_0 = arith.constant 0 : i32
    %c0_i32_1 = arith.constant 0 : i32
    return %arg0, %c0_i32, %c0_i32_0 : i32, i32, i32
  }
  func.func @transform_2(%arg0: i32, %arg1: i32) -> (i32, i32, i32) {
    %c0_i32 = arith.constant 0 : i32
    %c0_i32_0 = arith.constant 0 : i32
    %c0_i32_1 = arith.constant 0 : i32
    return %arg1, %c0_i32, %c0_i32_0 : i32, i32, i32
  }
  func.func @transform_3(%arg0: i32, %arg1: i32) -> (i32, i32, i32) {
    %c0_i32 = arith.constant 0 : i32
    %c0_i32_0 = arith.constant 0 : i32
    %c0_i32_1 = arith.constant 0 : i32
    return %arg1, %c0_i32, %c0_i32_0 : i32, i32, i32
  }
  func.func @transform_4(%arg0: i32, %arg1: i32) -> (i32, i32, i32) {
    %c0_i32 = arith.constant 0 : i32
    %c0_i32_0 = arith.constant 0 : i32
    %c0_i32_1 = arith.constant 0 : i32
    return %arg1, %c0_i32, %c0_i32_0 : i32, i32, i32
  }
  func.func @transform_5(%arg0: i32, %arg1: i32) -> (i32, i32, i32) {
    %c0_i32 = arith.constant 0 : i32
    %c0_i32_0 = arith.constant 0 : i32
    %c0_i32_1 = arith.constant 0 : i32
    return %arg1, %c0_i32, %c0_i32_0 : i32, i32, i32
  }
  func.func @transform_6(%arg0: i32, %arg1: i32) -> (i32, i32, i32) {
    %c0_i32 = arith.constant 0 : i32
    %c0_i32_0 = arith.constant 0 : i32
    %c0_i32_1 = arith.constant 0 : i32
    return %arg1, %c0_i32, %c0_i32_0 : i32, i32, i32
  }
  func.func @transform_7(%arg0: i32, %arg1: i32) -> (i32, i32, i32) {
    %c0_i32 = arith.constant 0 : i32
    %c0_i32_0 = arith.constant 0 : i32
    %c0_i32_1 = arith.constant 0 : i32
    return %arg1, %c0_i32, %c0_i32_0 : i32, i32, i32
  }
  func.func @transform_8(%arg0: i32, %arg1: i32) -> (i32, i32, i32, i32) {
    %c0_i32 = arith.constant 0 : i32
    %c0_i32_0 = arith.constant 0 : i32
    %c0_i32_1 = arith.constant 0 : i32
    return %arg0, %arg1, %c0_i32, %c0_i32_0 : i32, i32, i32, i32
  }
  func.func @transform_9(%arg0: i32, %arg1: i32) -> (i32, i32, i32, i32) {
    %c0_i32 = arith.constant 0 : i32
    %c0_i32_0 = arith.constant 0 : i32
    %c0_i32_1 = arith.constant 0 : i32
    return %arg0, %arg1, %c0_i32, %c0_i32_0 : i32, i32, i32, i32
  }
}

</mosaic_0001>

<llo_original>
// kernel: tpu_custom_call.1
$region0: #{tpu_custom_call.1}
  #allocation0 [shape = 'u32[]', space=smem, size = 0x4, offset = 0x4, fixed_abs, tag = 'smem constant byte address 0x4 - core index']
  #allocation1 [shape = 'u32[72,128]{1,0:T(1,128)}', space=vmem, size = 0x9000, scoped, tag = 'internal scratch']
  %s0 = inlined_call_operand.vmem [shape: bf16[2,128,128], index: 0, kind: input, shape index: {}]
  %s1 = inlined_call_operand.vmem [shape: f32[2,128,128], index: 1, kind: input, shape index: {}]
  %s2 = inlined_call_operand.vmem [shape: bf16[4,128,32], index: 2, kind: input, shape index: {}]
  %s3 = inlined_call_operand.vmem [shape: f32[4,1,32], index: 3, kind: input, shape index: {}]
  %s4 = inlined_call_operand.vmem [shape: bf16[4,128,32], index: 4, kind: input, shape index: {}]
  %s5 = inlined_call_operand.vmem [shape: f32[4,1,32], index: 5, kind: input, shape index: {}]
  %s6 = inlined_call_operand.vmem [shape: bf16[4,128,32], index: 6, kind: input, shape index: {}]
  %s7 = inlined_call_operand.vmem [shape: f32[4,1,32], index: 7, kind: input, shape index: {}]
  %s8 = inlined_call_operand.vmem [shape: f32[2,4,128,32], index: 8, kind: output, shape index: {0}]
  %s9 = inlined_call_operand.hbm [shape: f32[2,4,128,128], index: 9, kind: output, shape index: {1}]
  %10 = xla_tuple %s8, %s9
  %s11 = sld [smem:[#allocation0]]
  $region73: #{tpu_custom_call.1} parent=0
    _
  %s13 = ssub.s32 1, %s11
  %s14 = scalar_select 0, %s13, %s11
  $region1: #{tpu_custom_call.1} parent=0
    #allocation2 [shape = 'u8[131072]{0}', space=vmem, size = 0x20000, scoped, tag = 'output window, operand 1']
    #allocation3 [shape = 's32[2]{0}', space=sflag, size = 0x8, scoped, tag = 'scoped memory for tpu_custom_call.1']
    %15 = vsyncpa [#allocation3], 0
    %s16 = scalar_lea.sflag [#allocation3], 1
    %17 = vsyncpa %s16, 0
    loop: start=0, step=1, limit=10
    $region2: #{tpu_custom_call.1} parent=1 // loop_pre_header
      _
    $region3: #{tpu_custom_call.1} parent=1 // loop_header
      %s19 = sphi 0, %s23
      %p20 = scmp.ge.s32.totalorder %s19, 10
      %s26 = sphi 0, %s38
      %s27 = sphi 0, %s34
      %s28 = sphi 0, %s26
      %s29 = sphi 0, %s27
      %s30 = sphi 0, %s28
      %s31 = sphi 0, %s29
      %s41 = sphi 0, %s43
      %s44 = sphi 0, %s41
      %s45 = sphi 0, %s44
      %s61 = sphi 0, %s45
      %s67 = sphi 0, %s69
      %s70 = sphi 0, %s67
      %s71 = sphi 0, %s70
      %s87 = sphi 0, %s71
      %s93 = sphi 0, %s95
      %s96 = sphi 0, %s93
      %s97 = sphi 0, %s96
      %s113 = sphi 0, %s97
      %s119 = sphi 0, %s121
      %s122 = sphi 0, %s119
      %s123 = sphi 0, %s122
      %s139 = sphi 0, %s123
      %s145 = sphi 0, %s147
      %s148 = sphi 0, %s145
      %s149 = sphi 0, %s148
      %s165 = sphi 0, %s149
      %s171 = sphi 0, %s173
      %s174 = sphi 0, %s171
      %s175 = sphi 0, %s174
      %s191 = sphi 0, %s175
      %s197 = sphi 0, %s199
      %s200 = sphi 0, %s197
      %s201 = sphi 0, %s200
      %s217 = sphi 0, %s201
      %s223 = sphi 0, %s225
      %s226 = sphi 0, %s223
      %s227 = sphi 0, %s226
      %s243 = sphi 0, %s227
      %s251 = sphi 0, %s253
      %s254 = sphi 0, %s251
      %s255 = sphi 0, %s254
      %s271 = sphi 0, %s255
      %s279 = sphi 0, %s281
      %s282 = sphi 0, %s279
      %s283 = sphi 0, %s282
      %s299 = sphi 0, %s283
    $region4: #{tpu_custom_call.1} parent=1 // loop_header_branch
      %22 = sbr.rel (%p20) target = $region8
    $region5: #{tpu_custom_call.1} parent=1 // loop_body
      %s24 = ssub.s32 %s19, 1
      %s25 = ssub.s32 %s19, 2
      %s32 = sadd.s32 1, %s27
      %p33 = scmp.ge.s32.totalorder %s32, 4
      %s34 = scalar_select %p33, 0, %s32
      %s35 = sadd.s32 1, %s26
      %s36 = scalar_select %p33, %s35, %s26
      %p37 = scmp.ge.s32.totalorder %s36, 2
      %s38 = scalar_select %p37, 0, %s36
      %s39 = ssub.s32 %s26, %s38
      %p40 = scmp.eq.s32.totalorder %s39, 0
      %s42 = sadd.s32 %s41, 1
      %s43 = scalar_select %p40, %s41, %s42
      %p46 = pneg %p40
      %p47 = scmp.eq.s32.totalorder %s19, 7
      %p48 = por %p46, %p47
      %p49 = scmp.ne.s32.totalorder %s41, %s44
      %p50 = scmp.eq.s32.totalorder %s19, 0
      %p51 = por %p49, %p50
      %p52 = scmp.ne.s32.totalorder %s41, %s44
      %p53 = scmp.eq.s32.totalorder %s24, 7
      %p54 = por %p52, %p53
      %p55 = scmp.ne.s32.totalorder %s44, %s45
      %p56 = scmp.eq.s32.totalorder %s24, 0
      %p57 = por %p55, %p56
      %p58 = scmp.ne.s32.totalorder %s44, %s45
      %p59 = scmp.eq.s32.totalorder %s25, 7
      %p60 = por %p58, %p59
      %p62 = scmp.ne.s32.totalorder %s45, %s61
      %p63 = scmp.eq.s32.totalorder %s25, 0
      %p64 = por %p62, %p63
      %s65 = ssub.s32 %s26, %s38
      %p66 = scmp.eq.s32.totalorder %s65, 0
      %s68 = sadd.s32 %s67, 1
      %s69 = scalar_select %p66, %s67, %s68
      %p72 = pneg %p66
      %p73 = scmp.eq.s32.totalorder %s19, 7
      %p74 = por %p72, %p73
      %p75 = scmp.ne.s32.totalorder %s67, %s70
      %p76 = scmp.eq.s32.totalorder %s19, 0
      %p77 = por %p75, %p76
      %p78 = scmp.ne.s32.totalorder %s67, %s70
      %p79 = scmp.eq.s32.totalorder %s24, 7
      %p80 = por %p78, %p79
      %p81 = scmp.ne.s32.totalorder %s70, %s71
      %p82 = scmp.eq.s32.totalorder %s24, 0
      %p83 = por %p81, %p82
      %p84 = scmp.ne.s32.totalorder %s70, %s71
      %p85 = scmp.eq.s32.totalorder %s25, 7
      %p86 = por %p84, %p85
      %p88 = scmp.ne.s32.totalorder %s71, %s87
      %p89 = scmp.eq.s32.totalorder %s25, 0
      %p90 = por %p88, %p89
      %s91 = ssub.s32 %s27, %s34
      %p92 = scmp.eq.s32.totalorder %s91, 0
      %s94 = sadd.s32 %s93, 1
      %s95 = scalar_select %p92, %s93, %s94
      %p98 = pneg %p92
      %p99 = scmp.eq.s32.totalorder %s19, 7
      %p100 = por %p98, %p99
      %p101 = scmp.ne.s32.totalorder %s93, %s96
      %p102 = scmp.eq.s32.totalorder %s19, 0
      %p103 = por %p101, %p102
      %p104 = scmp.ne.s32.totalorder %s93, %s96
      %p105 = scmp.eq.s32.totalorder %s24, 7
      %p106 = por %p104, %p105
      %p107 = scmp.ne.s32.totalorder %s96, %s97
      %p108 = scmp.eq.s32.totalorder %s24, 0
      %p109 = por %p107, %p108
      %p110 = scmp.ne.s32.totalorder %s96, %s97
      %p111 = scmp.eq.s32.totalorder %s25, 7
      %p112 = por %p110, %p111
      %p114 = scmp.ne.s32.totalorder %s97, %s113
      %p115 = scmp.eq.s32.totalorder %s25, 0
      %p116 = por %p114, %p115
      %s117 = ssub.s32 %s27, %s34
      %p118 = scmp.eq.s32.totalorder %s117, 0
      %s120 = sadd.s32 %s119, 1
      %s121 = scalar_select %p118, %s119, %s120
      %p124 = pneg %p118
      %p125 = scmp.eq.s32.totalorder %s19, 7
      %p126 = por %p124, %p125
      %p127 = scmp.ne.s32.totalorder %s119, %s122
      %p128 = scmp.eq.s32.totalorder %s19, 0
      %p129 = por %p127, %p128
      %p130 = scmp.ne.s32.totalorder %s119, %s122
      %p131 = scmp.eq.s32.totalorder %s24, 7
      %p132 = por %p130, %p131
      %p133 = scmp.ne.s32.totalorder %s122, %s123
      %p134 = scmp.eq.s32.totalorder %s24, 0
      %p135 = por %p133, %p134
      %p136 = scmp.ne.s32.totalorder %s122, %s123
      %p137 = scmp.eq.s32.totalorder %s25, 7
      %p138 = por %p136, %p137
      %p140 = scmp.ne.s32.totalorder %s123, %s139
      %p141 = scmp.eq.s32.totalorder %s25, 0
      %p142 = por %p140, %p141
      %s143 = ssub.s32 %s27, %s34
      %p144 = scmp.eq.s32.totalorder %s143, 0
      %s146 = sadd.s32 %s145, 1
      %s147 = scalar_select %p144, %s145, %s146
      %p150 = pneg %p144
      %p151 = scmp.eq.s32.totalorder %s19, 7
      %p152 = por %p150, %p151
      %p153 = scmp.ne.s32.totalorder %s145, %s148
      %p154 = scmp.eq.s32.totalorder %s19, 0
      %p155 = por %p153, %p154
      %p156 = scmp.ne.s32.totalorder %s145, %s148
      %p157 = scmp.eq.s32.totalorder %s24, 7
      %p158 = por %p156, %p157
      %p159 = scmp.ne.s32.totalorder %s148, %s149
      %p160 = scmp.eq.s32.totalorder %s24, 0
      %p161 = por %p159, %p160
      %p162 = scmp.ne.s32.totalorder %s148, %s149
      %p163 = scmp.eq.s32.totalorder %s25, 7
      %p164 = por %p162, %p163
      %p166 = scmp.ne.s32.totalorder %s149, %s165
      %p167 = scmp.eq.s32.totalorder %s25, 0
      %p168 = por %p166, %p167
      %s169 = ssub.s32 %s27, %s34
      %p170 = scmp.eq.s32.totalorder %s169, 0
      %s172 = sadd.s32 %s171, 1
      %s173 = scalar_select %p170, %s171, %s172
      %p176 = pneg %p170
      %p177 = scmp.eq.s32.totalorder %s19, 7
      %p178 = por %p176, %p177
      %p179 = scmp.ne.s32.totalorder %s171, %s174
      %p180 = scmp.eq.s32.totalorder %s19, 0
      %p181 = por %p179, %p180
      %p182 = scmp.ne.s32.totalorder %s171, %s174
      %p183 = scmp.eq.s32.totalorder %s24, 7
      %p184 = por %p182, %p183
      %p185 = scmp.ne.s32.totalorder %s174, %s175
      %p186 = scmp.eq.s32.totalorder %s24, 0
      %p187 = por %p185, %p186
      %p188 = scmp.ne.s32.totalorder %s174, %s175
      %p189 = scmp.eq.s32.totalorder %s25, 7
      %p190 = por %p188, %p189
      %p192 = scmp.ne.s32.totalorder %s175, %s191
      %p193 = scmp.eq.s32.totalorder %s25, 0
      %p194 = por %p192, %p193
      %s195 = ssub.s32 %s27, %s34
      %p196 = scmp.eq.s32.totalorder %s195, 0
      %s198 = sadd.s32 %s197, 1
      %s199 = scalar_select %p196, %s197, %s198
      %p202 = pneg %p196
      %p203 = scmp.eq.s32.totalorder %s19, 7
      %p204 = por %p202, %p203
      %p205 = scmp.ne.s32.totalorder %s197, %s200
      %p206 = scmp.eq.s32.totalorder %s19, 0
      %p207 = por %p205, %p206
      %p208 = scmp.ne.s32.totalorder %s197, %s200
      %p209 = scmp.eq.s32.totalorder %s24, 7
      %p210 = por %p208, %p209
      %p211 = scmp.ne.s32.totalorder %s200, %s201
      %p212 = scmp.eq.s32.totalorder %s24, 0
      %p213 = por %p211, %p212
      %p214 = scmp.ne.s32.totalorder %s200, %s201
      %p215 = scmp.eq.s32.totalorder %s25, 7
      %p216 = por %p214, %p215
      %p218 = scmp.ne.s32.totalorder %s201, %s217
      %p219 = scmp.eq.s32.totalorder %s25, 0
      %p220 = por %p218, %p219
      %s221 = ssub.s32 %s27, %s34
      %p222 = scmp.eq.s32.totalorder %s221, 0
      %s224 = sadd.s32 %s223, 1
      %s225 = scalar_select %p222, %s223, %s224
      %p228 = pneg %p222
      %p229 = scmp.eq.s32.totalorder %s19, 7
      %p230 = por %p228, %p229
      %p231 = scmp.ne.s32.totalorder %s223, %s226
      %p232 = scmp.eq.s32.totalorder %s19, 0
      %p233 = por %p231, %p232
      %p234 = scmp.ne.s32.totalorder %s223, %s226
      %p235 = scmp.eq.s32.totalorder %s24, 7
      %p236 = por %p234, %p235
      %p237 = scmp.ne.s32.totalorder %s226, %s227
      %p238 = scmp.eq.s32.totalorder %s24, 0
      %p239 = por %p237, %p238
      %p240 = scmp.ne.s32.totalorder %s226, %s227
      %p241 = scmp.eq.s32.totalorder %s25, 7
      %p242 = por %p240, %p241
      %p244 = scmp.ne.s32.totalorder %s227, %s243
      %p245 = scmp.eq.s32.totalorder %s25, 0
      %p246 = por %p244, %p245
      %s247 = ssub.s32 %s26, %s38
      %s248 = ssub.s32 %s27, %s34
      %s249 = sor.u32 %s247, %s248
      %p250 = scmp.eq.s32.totalorder %s249, 0
      %s252 = sadd.s32 %s251, 1
      %s253 = scalar_select %p250, %s251, %s252
      %p256 = pneg %p250
      %p257 = scmp.eq.s32.totalorder %s19, 7
      %p258 = por %p256, %p257
      %p259 = scmp.ne.s32.totalorder %s251, %s254
      %p260 = scmp.eq.s32.totalorder %s19, 0
      %p261 = por %p259, %p260
      %p262 = scmp.ne.s32.totalorder %s251, %s254
      %p263 = scmp.eq.s32.totalorder %s24, 7
      %p264 = por %p262, %p263
      %p265 = scmp.ne.s32.totalorder %s254, %s255
      %p266 = scmp.eq.s32.totalorder %s24, 0
      %p267 = por %p265, %p266
      %p268 = scmp.ne.s32.totalorder %s254, %s255
      %p269 = scmp.eq.s32.totalorder %s25, 7
      %p270 = por %p268, %p269
      %p272 = scmp.ne.s32.totalorder %s255, %s271
      %p273 = scmp.eq.s32.totalorder %s25, 0
      %p274 = por %p272, %p273
      %s275 = ssub.s32 %s26, %s38
      %s276 = ssub.s32 %s27, %s34
      %s277 = sor.u32 %s275, %s276
      %p278 = scmp.eq.s32.totalorder %s277, 0
      %s280 = sadd.s32 %s279, 1
      %s281 = scalar_select %p278, %s279, %s280
      %p284 = pneg %p278
      %p285 = scmp.eq.s32.totalorder %s19, 7
      %p286 = por %p284, %p285
      %p287 = scmp.ne.s32.totalorder %s279, %s282
      %p288 = scmp.eq.s32.totalorder %s19, 0
      %p289 = por %p287, %p288
      %p290 = scmp.ne.s32.totalorder %s279, %s282
      %p291 = scmp.eq.s32.totalorder %s24, 7
      %p292 = por %p290, %p291
      %p293 = scmp.ne.s32.totalorder %s282, %s283
      %p294 = scmp.eq.s32.totalorder %s24, 0
      %p295 = por %p293, %p294
      %p296 = scmp.ne.s32.totalorder %s282, %s283
      %p297 = scmp.eq.s32.totalorder %s25, 7
      %p298 = por %p296, %p297
      %p300 = scmp.ne.s32.totalorder %s283, %s299
      %p301 = scmp.eq.s32.totalorder %s25, 0
      %p302 = por %p300, %p301
      %p303 = scmp.le.s32.totalorder 1, %s19
      %p304 = scmp.lt.s32.totalorder %s19, 9
      %p305 = pnand %p303, %p304
      %p306 = pneg %p305
      // Predicated region
      $region9: #{tpu_custom_call.1} parent=5 // pred_check
        _
      $region10: #{tpu_custom_call.1} parent=5 // pred_check_branch
        %308 = sbr.rel (%p305) target = $region12
      $region11: #{tpu_custom_call.1} parent=5 // pred_region
        %s309 = ssub.s32 %s19, 1
      $region12: #{tpu_custom_call.1} parent=5 // pred_fallthru
        _
      %p310 = scmp.lt.s32.totalorder %s19, 8
      // Predicated region
      $region13: #{tpu_custom_call.1} parent=5 // pred_check
        %p311 = pneg %p310
      $region14: #{tpu_custom_call.1} parent=5 // pred_check_branch
        %313 = sbr.rel (%p311) target = $region16
      $region15: #{tpu_custom_call.1} parent=5 // pred_region
        // Predicated region
        $region17: #{tpu_custom_call.1} parent=15 // pred_check
          %p314 = pneg %p51
        $region18: #{tpu_custom_call.1} parent=15 // pred_check_branch
          %316 = sbr.rel (%p314) target = $region20
        $region19: #{tpu_custom_call.1} parent=15 // pred_region
          %p317 = scmp.lt.s32.totalorder %s26, 1
          %s318 = scalar_select %p317, %s26, 1
          %s319 = smul.addr %s318, 16
          %s320 = smul.addr %s319, 4
          %s321 = scalar_lea.vmem %s0, %s320
        $region20: #{tpu_custom_call.1} parent=15 // pred_fallthru
          _
        // Predicated region
        $region21: #{tpu_custom_call.1} parent=15 // pred_check
          %p322 = pneg %p77
        $region22: #{tpu_custom_call.1} parent=15 // pred_check_branch
          %324 = sbr.rel (%p322) target = $region24
        $region23: #{tpu_custom_call.1} parent=15 // pred_region
          %p325 = scmp.lt.s32.totalorder %s26, 1
          %s326 = scalar_select %p325, %s26, 1
          %s327 = smul.addr %s326, 16
          %s328 = smul.addr %s327, 8
          %s329 = scalar_lea.vmem %s1, %s328
        $region24: #{tpu_custom_call.1} parent=15 // pred_fallthru
          _
        // Predicated region
        $region25: #{tpu_custom_call.1} parent=15 // pred_check
          %p330 = pneg %p103
        $region26: #{tpu_custom_call.1} parent=15 // pred_check_branch
          %332 = sbr.rel (%p330) target = $region28
        $region27: #{tpu_custom_call.1} parent=15 // pred_region
          %p333 = scmp.lt.s32.totalorder %s27, 3
          %s334 = scalar_select %p333, %s27, 3
          %s335 = smul.addr %s334, 16
          %s336 = smul.addr %s335, 4
          %s337 = scalar_lea.vmem %s2, %s336
        $region28: #{tpu_custom_call.1} parent=15 // pred_fallthru
          _
        // Predicated region
        $region29: #{tpu_custom_call.1} parent=15 // pred_check
          %p338 = pneg %p129
        $region30: #{tpu_custom_call.1} parent=15 // pred_check_branch
          %340 = sbr.rel (%p338) target = $region32
        $region31: #{tpu_custom_call.1} parent=15 // pred_region
          %p341 = scmp.lt.s32.totalorder %s27, 3
          %s342 = scalar_select %p341, %s27, 3
          %s343 = scalar_lea.vmem %s3, %s342
        $region32: #{tpu_custom_call.1} parent=15 // pred_fallthru
          _
        // Predicated region
        $region33: #{tpu_custom_call.1} parent=15 // pred_check
          %p344 = pneg %p155
        $region34: #{tpu_custom_call.1} parent=15 // pred_check_branch
          %346 = sbr.rel (%p344) target = $region36
        $region35: #{tpu_custom_call.1} parent=15 // pred_region
          %p347 = scmp.lt.s32.totalorder %s27, 3
          %s348 = scalar_select %p347, %s27, 3
          %s349 = smul.addr %s348, 16
          %s350 = smul.addr %s349, 4
          %s351 = scalar_lea.vmem %s4, %s350
        $region36: #{tpu_custom_call.1} parent=15 // pred_fallthru
          _
        // Predicated region
        $region37: #{tpu_custom_call.1} parent=15 // pred_check
          %p352 = pneg %p181
        $region38: #{tpu_custom_call.1} parent=15 // pred_check_branch
          %354 = sbr.rel (%p352) target = $region40
        $region39: #{tpu_custom_call.1} parent=15 // pred_region
          %p355 = scmp.lt.s32.totalorder %s27, 3
          %s356 = scalar_select %p355, %s27, 3
          %s357 = scalar_lea.vmem %s5, %s356
        $region40: #{tpu_custom_call.1} parent=15 // pred_fallthru
          _
        // Predicated region
        $region41: #{tpu_custom_call.1} parent=15 // pred_check
          %p358 = pneg %p207
        $region42: #{tpu_custom_call.1} parent=15 // pred_check_branch
          %360 = sbr.rel (%p358) target = $region44
        $region43: #{tpu_custom_call.1} parent=15 // pred_region
          %p361 = scmp.lt.s32.totalorder %s27, 3
          %s362 = scalar_select %p361, %s27, 3
          %s363 = smul.addr %s362, 16
          %s364 = smul.addr %s363, 4
          %s365 = scalar_lea.vmem %s6, %s364
        $region44: #{tpu_custom_call.1} parent=15 // pred_fallthru
          _
        // Predicated region
        $region45: #{tpu_custom_call.1} parent=15 // pred_check
          %p366 = pneg %p233
        $region46: #{tpu_custom_call.1} parent=15 // pred_check_branch
          %368 = sbr.rel (%p366) target = $region48
        $region47: #{tpu_custom_call.1} parent=15 // pred_region
          %p369 = scmp.lt.s32.totalorder %s27, 3
          %s370 = scalar_select %p369, %s27, 3
          %s371 = scalar_lea.vmem %s7, %s370
        $region48: #{tpu_custom_call.1} parent=15 // pred_fallthru
          _
      $region16: #{tpu_custom_call.1} parent=5 // pred_fallthru
        _
      %p372 = scmp.le.s32.totalorder 1, %s19
      %p373 = scmp.lt.s32.totalorder %s19, 9
      %p374 = pnand %p372, %p373
      %p375 = pneg %p374
      // Predicated region
      $region49: #{tpu_custom_call.1} parent=5 // pred_check
        _
      $region50: #{tpu_custom_call.1} parent=5 // pred_check_branch
        %377 = sbr.rel (%p374) target = $region52
      $region51: #{tpu_custom_call.1} parent=5 // pred_region
        %s378 = ssub.s32 %s19, 1
        %p379 = scmp.lt.s32.totalorder %s28, 1
        %s380 = scalar_select %p379, %s28, 1
        %s381 = smul.addr %s380, 16
        %s382 = smul.addr %s381, 4
        %s383 = scalar_lea.vmem %s0, %s382
        %p384 = pneg %p57
        %p385 = pneg %p54
        %p386 = scmp.lt.s32.totalorder %s28, 1
        %s387 = scalar_select %p386, %s28, 1
        %s388 = smul.addr %s387, 16
        %s389 = smul.addr %s388, 8
        %s390 = scalar_lea.vmem %s1, %s389
        %p391 = pneg %p83
        %p392 = pneg %p80
        %p393 = scmp.lt.s32.totalorder %s29, 3
        %s394 = scalar_select %p393, %s29, 3
        %s395 = smul.addr %s394, 16
        %s396 = smul.addr %s395, 4
        %s397 = scalar_lea.vmem %s2, %s396
        %p398 = pneg %p109
        %p399 = pneg %p106
        %p400 = scmp.lt.s32.totalorder %s29, 3
        %s401 = scalar_select %p400, %s29, 3
        %s402 = scalar_lea.vmem %s3, %s401
        %p403 = pneg %p135
        %p404 = pneg %p132
        %p405 = scmp.lt.s32.totalorder %s29, 3
        %s406 = scalar_select %p405, %s29, 3
        %s407 = smul.addr %s406, 16
        %s408 = smul.addr %s407, 4
        %s409 = scalar_lea.vmem %s4, %s408
        %p410 = pneg %p161
        %p411 = pneg %p158
        %p412 = scmp.lt.s32.totalorder %s29, 3
        %s413 = scalar_select %p412, %s29, 3
        %s414 = scalar_lea.vmem %s5, %s413
        %p415 = pneg %p187
        %p416 = pneg %p184
        %p417 = scmp.lt.s32.totalorder %s29, 3
        %s418 = scalar_select %p417, %s29, 3
        %s419 = smul.addr %s418, 16
        %s420 = smul.addr %s419, 4
        %s421 = scalar_lea.vmem %s6, %s420
        %p422 = pneg %p213
        %p423 = pneg %p210
        %p424 = scmp.lt.s32.totalorder %s29, 3
        %s425 = scalar_select %p424, %s29, 3
        %s426 = scalar_lea.vmem %s7, %s425
        %p427 = pneg %p239
        %p428 = pneg %p236
        %p429 = pneg %p267
        %p430 = pneg %p264
        %p431 = scmp.lt.s32.totalorder %s28, 1
        %s432 = scalar_select %p431, %s28, 1
        %p433 = scmp.lt.s32.totalorder %s29, 3
        %s434 = scalar_select %p433, %s29, 3
        %s435 = smul.addr %s434, 16
        %s436 = smul.addr %s432, 64
        %s437 = sadd.s32 %s435, %s436
        %s438 = smul.addr %s437, 8
        %s439 = scalar_lea.vmem %s8, %s438
        %p440 = pneg %p295
        %p441 = pneg %p292
        %s442 = sand.u32 %s282, 1
        %s443 = scalar_lea.sflag [#allocation3], %s442
        %s444 = sand.u32 %s282, 1
        %s445 = smul.addr %s444, 128
        %s446 = scalar_lea.vmem [#allocation2], %s445
        %p447 = scmp.lt.s32.totalorder %s28, 1
        %s448 = scalar_select %p447, %s28, 1
        %s449 = smul.addr %s448, 16
        %s450 = smul.addr %s449, 4
        %s451 = scalar_lea.vmem %s0, %s450
        %p452 = scmp.lt.s32.totalorder %s28, 1
        %s453 = scalar_select %p452, %s28, 1
        %s454 = smul.addr %s453, 16
        %s455 = smul.addr %s454, 8
        %s456 = scalar_lea.vmem %s1, %s455
        %p457 = scmp.lt.s32.totalorder %s29, 3
        %s458 = scalar_select %p457, %s29, 3
        %s459 = smul.addr %s458, 16
        %s460 = smul.addr %s459, 4
        %s461 = scalar_lea.vmem %s2, %s460
        %p462 = scmp.lt.s32.totalorder %s29, 3
        %s463 = scalar_select %p462, %s29, 3
        %s464 = scalar_lea.vmem %s3, %s463
        %p465 = scmp.lt.s32.totalorder %s29, 3
        %s466 = scalar_select %p465, %s29, 3
        %s467 = smul.addr %s466, 16
        %s468 = smul.addr %s467, 4
        %s469 = scalar_lea.vmem %s4, %s468
        %p470 = scmp.lt.s32.totalorder %s29, 3
        %s471 = scalar_select %p470, %s29, 3
        %s472 = scalar_lea.vmem %s5, %s471
        %p473 = scmp.lt.s32.totalorder %s29, 3
        %s474 = scalar_select %p473, %s29, 3
        %s475 = smul.addr %s474, 16
        %s476 = smul.addr %s475, 4
        %s477 = scalar_lea.vmem %s6, %s476
        %p478 = scmp.lt.s32.totalorder %s29, 3
        %s479 = scalar_select %p478, %s29, 3
        %s480 = scalar_lea.vmem %s7, %s479
        %p481 = scmp.lt.s32.totalorder %s28, 1
        %s482 = scalar_select %p481, %s28, 1
        %p483 = scmp.lt.s32.totalorder %s29, 3
        %s484 = scalar_select %p483, %s29, 3
        %s485 = smul.addr %s484, 16
        %s486 = smul.addr %s482, 64
        %s487 = sadd.s32 %s485, %s486
        %s488 = smul.addr %s487, 8
        %s489 = scalar_lea.vmem %s8, %s488
        %v490 = vld [vmem:[%s451] sm:$0xf]
        %v491 = vld [vmem:[%s451 + $0x4] sm:$0xf]
        %v492 = vld [vmem:[%s451 + $0x8] sm:$0xf]
        %v493 = vld [vmem:[%s451 + $0xc] sm:$0xf]
        %v494 = vld [vmem:[%s451 + $0x10] sm:$0xf]
        %v495 = vld [vmem:[%s451 + $0x14] sm:$0xf]
        %v496 = vld [vmem:[%s451 + $0x18] sm:$0xf]
        %v497 = vld [vmem:[%s451 + $0x1c] sm:$0xf]
        %v498 = vld [vmem:[%s451 + $0x20] sm:$0xf]
        %v499 = vld [vmem:[%s451 + $0x24] sm:$0xf]
        %v500 = vld [vmem:[%s451 + $0x28] sm:$0xf]
        %v501 = vld [vmem:[%s451 + $0x2c] sm:$0xf]
        %v502 = vld [vmem:[%s451 + $0x30] sm:$0xf]
        %v503 = vld [vmem:[%s451 + $0x34] sm:$0xf]
        %v504 = vld [vmem:[%s451 + $0x38] sm:$0xf]
        %v505 = vld [vmem:[%s451 + $0x3c] sm:$0xf]
        %v506 = vld [vmem:[%s461] sm:$0xf]
        %v507 = vld [vmem:[%s461 + $0x4] sm:$0xf]
        %v508 = vld [vmem:[%s461 + $0x8] sm:$0xf]
        %v509 = vld [vmem:[%s461 + $0xc] sm:$0xf]
        %v510 = vld [vmem:[%s461 + $0x10] sm:$0xf]
        %v511 = vld [vmem:[%s461 + $0x14] sm:$0xf]
        %v512 = vld [vmem:[%s461 + $0x18] sm:$0xf]
        %v513 = vld [vmem:[%s461 + $0x1c] sm:$0xf]
        %v514 = vld [vmem:[%s461 + $0x20] sm:$0xf]
        %v515 = vld [vmem:[%s461 + $0x24] sm:$0xf]
        %v516 = vld [vmem:[%s461 + $0x28] sm:$0xf]
        %v517 = vld [vmem:[%s461 + $0x2c] sm:$0xf]
        %v518 = vld [vmem:[%s461 + $0x30] sm:$0xf]
        %v519 = vld [vmem:[%s461 + $0x34] sm:$0xf]
        %v520 = vld [vmem:[%s461 + $0x38] sm:$0xf]
        %v521 = vld [vmem:[%s461 + $0x3c] sm:$0xf]
        %v522 = vld [vmem:[%s464] sm:$0x1]
        %v524 = vperm.slane %v522, 0
        %v542 = vunpack.c.l.b16 %v490
        %v543 = vunpack.c.l.b16 %v491
        %v544 = vunpack.c.l.b16 %v492
        %v545 = vunpack.c.l.b16 %v493
        %v546 = vunpack.c.l.b16 %v494
        %v547 = vunpack.c.l.b16 %v495
        %v548 = vunpack.c.l.b16 %v496
        %v549 = vunpack.c.l.b16 %v497
        %v550 = vunpack.c.l.b16 %v498
        %v551 = vunpack.c.l.b16 %v499
        %v552 = vunpack.c.l.b16 %v500
        %v553 = vunpack.c.l.b16 %v501
        %v554 = vunpack.c.l.b16 %v502
        %v555 = vunpack.c.l.b16 %v503
        %v556 = vunpack.c.l.b16 %v504
        %v557 = vunpack.c.l.b16 %v505
        %v558 = vpack.c.b16 %v543, %v542
        %v559 = vpack.c.b16 %v545, %v544
        %v560 = vpack.c.b16 %v547, %v546
        %v561 = vpack.c.b16 %v549, %v548
        %v562 = vpack.c.b16 %v551, %v550
        %v563 = vpack.c.b16 %v553, %v552
        %v564 = vpack.c.b16 %v555, %v554
        %v565 = vpack.c.b16 %v557, %v556
        %v590 = vunpack.c.l.b16 %v506
        %v591 = vunpack.c.l.b16 %v507
        %v592 = vunpack.c.l.b16 %v508
        %v593 = vunpack.c.l.b16 %v509
        %v594 = vunpack.c.l.b16 %v510
        %v595 = vunpack.c.l.b16 %v511
        %v596 = vunpack.c.l.b16 %v512
        %v597 = vunpack.c.l.b16 %v513
        %v598 = vunpack.c.l.b16 %v514
        %v599 = vunpack.c.l.b16 %v515
        %v600 = vunpack.c.l.b16 %v516
        %v601 = vunpack.c.l.b16 %v517
        %v602 = vunpack.c.l.b16 %v518
        %v603 = vunpack.c.l.b16 %v519
        %v604 = vunpack.c.l.b16 %v520
        %v605 = vunpack.c.l.b16 %v521
        %v606 = vpack.c.b16 %v591, %v590
        %v607 = vpack.c.b16 %v593, %v592
        %v608 = vpack.c.b16 %v595, %v594
        %v609 = vpack.c.b16 %v597, %v596
        %v610 = vpack.c.b16 %v599, %v598
        %v611 = vpack.c.b16 %v601, %v600
        %v612 = vpack.c.b16 %v603, %v602
        %v613 = vpack.c.b16 %v605, %v604
        %622 = vmatpush.bf16.msra.mxu0 %v613
        %623 = vmatpush.bf16.msra.mxu0 %v612
        %624 = vmatpush.bf16.msra.mxu0 %v611
        %625 = vmatpush.bf16.msra.mxu0 %v610
        %626 = vmatpush.bf16.msra.mxu0 %v609
        %627 = vmatpush.bf16.msra.mxu0 %v608
        %628 = vmatpush.bf16.msra.mxu0 %v607
        %629 = vmatpush.bf16.msra.mxu0 %v606
        %630 = vmatmul.bf16.gmra.mxu0 %v558
        %v631 = vpop.f32.mrf.mxu0
        %v632 = vadd.f32 %v524, %v631
        %v633 = vpop.f32.mrf.mxu0
        %v634 = vadd.f32 %v524, %v633
        %635 = vmatmul.bf16.gmra.mxu0 %v559
        %v636 = vpop.f32.mrf.mxu0
        %v637 = vadd.f32 %v524, %v636
        %v638 = vpop.f32.mrf.mxu0
        %v639 = vadd.f32 %v524, %v638
        %640 = vmatmul.bf16.gmra.mxu0 %v560
        %v641 = vpop.f32.mrf.mxu0
        %v642 = vadd.f32 %v524, %v641
        %v643 = vpop.f32.mrf.mxu0
        %v644 = vadd.f32 %v524, %v643
        %645 = vmatmul.bf16.gmra.mxu0 %v561
        %v646 = vpop.f32.mrf.mxu0
        %v647 = vadd.f32 %v524, %v646
        %v648 = vpop.f32.mrf.mxu0
        %v649 = vadd.f32 %v524, %v648
        %650 = vmatmul.bf16.gmra.mxu0 %v562
        %v651 = vpop.f32.mrf.mxu0
        %v652 = vadd.f32 %v524, %v651
        %v653 = vpop.f32.mrf.mxu0
        %v654 = vadd.f32 %v524, %v653
        %655 = vmatmul.bf16.gmra.mxu0 %v563
        %v656 = vpop.f32.mrf.mxu0
        %v657 = vadd.f32 %v524, %v656
        %v658 = vpop.f32.mrf.mxu0
        %v659 = vadd.f32 %v524, %v658
        %660 = vmatmul.bf16.gmra.mxu0 %v564
        %v661 = vpop.f32.mrf.mxu0
        %v662 = vadd.f32 %v524, %v661
        %v663 = vpop.f32.mrf.mxu0
        %v664 = vadd.f32 %v524, %v663
        %665 = vmatmul.bf16.gmra.mxu0 %v565
        %v666 = vpop.f32.mrf.mxu0
        %v667 = vadd.f32 %v524, %v666
        %v668 = vpop.f32.mrf.mxu0
        %v669 = vadd.f32 %v524, %v668
        %670 = vdwg.mxu0
        %v671 = vld [vmem:[%s469] sm:$0xf]
        %v672 = vld [vmem:[%s469 + $0x4] sm:$0xf]
        %v673 = vld [vmem:[%s469 + $0x8] sm:$0xf]
        %v674 = vld [vmem:[%s469 + $0xc] sm:$0xf]
        %v675 = vld [vmem:[%s469 + $0x10] sm:$0xf]
        %v676 = vld [vmem:[%s469 + $0x14] sm:$0xf]
        %v677 = vld [vmem:[%s469 + $0x18] sm:$0xf]
        %v678 = vld [vmem:[%s469 + $0x1c] sm:$0xf]
        %v679 = vld [vmem:[%s469 + $0x20] sm:$0xf]
        %v680 = vld [vmem:[%s469 + $0x24] sm:$0xf]
        %v681 = vld [vmem:[%s469 + $0x28] sm:$0xf]
        %v682 = vld [vmem:[%s469 + $0x2c] sm:$0xf]
        %v683 = vld [vmem:[%s469 + $0x30] sm:$0xf]
        %v684 = vld [vmem:[%s469 + $0x34] sm:$0xf]
        %v685 = vld [vmem:[%s469 + $0x38] sm:$0xf]
        %v686 = vld [vmem:[%s469 + $0x3c] sm:$0xf]
        %v687 = vld [vmem:[%s472] sm:$0x1]
        %v689 = vperm.slane %v687, 0
        %v707 = vunpack.c.l.b16 %v671
        %v708 = vunpack.c.l.b16 %v672
        %v709 = vunpack.c.l.b16 %v673
        %v710 = vunpack.c.l.b16 %v674
        %v711 = vunpack.c.l.b16 %v675
        %v712 = vunpack.c.l.b16 %v676
        %v713 = vunpack.c.l.b16 %v677
        %v714 = vunpack.c.l.b16 %v678
        %v715 = vunpack.c.l.b16 %v679
        %v716 = vunpack.c.l.b16 %v680
        %v717 = vunpack.c.l.b16 %v681
        %v718 = vunpack.c.l.b16 %v682
        %v719 = vunpack.c.l.b16 %v683
        %v720 = vunpack.c.l.b16 %v684
        %v721 = vunpack.c.l.b16 %v685
        %v722 = vunpack.c.l.b16 %v686
        %v723 = vpack.c.b16 %v708, %v707
        %v724 = vpack.c.b16 %v710, %v709
        %v725 = vpack.c.b16 %v712, %v711
        %v726 = vpack.c.b16 %v714, %v713
        %v727 = vpack.c.b16 %v716, %v715
        %v728 = vpack.c.b16 %v718, %v717
        %v729 = vpack.c.b16 %v720, %v719
        %v730 = vpack.c.b16 %v722, %v721
        %739 = vmatpush.bf16.msra.mxu0 %v730
        %740 = vmatpush.bf16.msra.mxu0 %v729
        %741 = vmatpush.bf16.msra.mxu0 %v728
        %742 = vmatpush.bf16.msra.mxu0 %v727
        %743 = vmatpush.bf16.msra.mxu0 %v726
        %744 = vmatpush.bf16.msra.mxu0 %v725
        %745 = vmatpush.bf16.msra.mxu0 %v724
        %746 = vmatpush.bf16.msra.mxu0 %v723
        %747 = vmatmul.bf16.gmra.mxu0 %v558
        %v748 = vpop.f32.mrf.mxu0
        %v749 = vadd.f32 %v689, %v748
        %v750 = vpop.f32.mrf.mxu0
        %v751 = vadd.f32 %v689, %v750
        %752 = vmatmul.bf16.gmra.mxu0 %v559
        %v753 = vpop.f32.mrf.mxu0
        %v754 = vadd.f32 %v689, %v753
        %v755 = vpop.f32.mrf.mxu0
        %v756 = vadd.f32 %v689, %v755
        %757 = vmatmul.bf16.gmra.mxu0 %v560
        %v758 = vpop.f32.mrf.mxu0
        %v759 = vadd.f32 %v689, %v758
        %v760 = vpop.f32.mrf.mxu0
        %v761 = vadd.f32 %v689, %v760
        %762 = vmatmul.bf16.gmra.mxu0 %v561
        %v763 = vpop.f32.mrf.mxu0
        %v764 = vadd.f32 %v689, %v763
        %v765 = vpop.f32.mrf.mxu0
        %v766 = vadd.f32 %v689, %v765
        %767 = vmatmul.bf16.gmra.mxu0 %v562
        %v768 = vpop.f32.mrf.mxu0
        %v769 = vadd.f32 %v689, %v768
        %v770 = vpop.f32.mrf.mxu0
        %v771 = vadd.f32 %v689, %v770
        %772 = vmatmul.bf16.gmra.mxu0 %v563
        %v773 = vpop.f32.mrf.mxu0
        %v774 = vadd.f32 %v689, %v773
        %v775 = vpop.f32.mrf.mxu0
        %v776 = vadd.f32 %v689, %v775
        %777 = vmatmul.bf16.gmra.mxu0 %v564
        %v778 = vpop.f32.mrf.mxu0
        %v779 = vadd.f32 %v689, %v778
        %v780 = vpop.f32.mrf.mxu0
        %v781 = vadd.f32 %v689, %v780
        %782 = vmatmul.bf16.gmra.mxu0 %v565
        %v783 = vpop.f32.mrf.mxu0
        %v784 = vadd.f32 %v689, %v783
        %v785 = vpop.f32.mrf.mxu0
        %v786 = vadd.f32 %v689, %v785
        %787 = vdwg.mxu0
        %v788 = vld [vmem:[%s477] sm:$0xf]
        %v789 = vld [vmem:[%s477 + $0x4] sm:$0xf]
        %v790 = vld [vmem:[%s477 + $0x8] sm:$0xf]
        %v791 = vld [vmem:[%s477 + $0xc] sm:$0xf]
        %v792 = vld [vmem:[%s477 + $0x10] sm:$0xf]
        %v793 = vld [vmem:[%s477 + $0x14] sm:$0xf]
        %v794 = vld [vmem:[%s477 + $0x18] sm:$0xf]
        %v795 = vld [vmem:[%s477 + $0x1c] sm:$0xf]
        %v796 = vld [vmem:[%s477 + $0x20] sm:$0xf]
        %v797 = vld [vmem:[%s477 + $0x24] sm:$0xf]
        %v798 = vld [vmem:[%s477 + $0x28] sm:$0xf]
        %v799 = vld [vmem:[%s477 + $0x2c] sm:$0xf]
        %v800 = vld [vmem:[%s477 + $0x30] sm:$0xf]
        %v801 = vld [vmem:[%s477 + $0x34] sm:$0xf]
        %v802 = vld [vmem:[%s477 + $0x38] sm:$0xf]
        %v803 = vld [vmem:[%s477 + $0x3c] sm:$0xf]
        %v804 = vld [vmem:[%s480] sm:$0x1]
        %v806 = vperm.slane %v804, 0
        %v824 = vunpack.c.l.b16 %v788
        %v825 = vunpack.c.l.b16 %v789
        %v826 = vunpack.c.l.b16 %v790
        %v827 = vunpack.c.l.b16 %v791
        %v828 = vunpack.c.l.b16 %v792
        %v829 = vunpack.c.l.b16 %v793
        %v830 = vunpack.c.l.b16 %v794
        %v831 = vunpack.c.l.b16 %v795
        %v832 = vunpack.c.l.b16 %v796
        %v833 = vunpack.c.l.b16 %v797
        %v834 = vunpack.c.l.b16 %v798
        %v835 = vunpack.c.l.b16 %v799
        %v836 = vunpack.c.l.b16 %v800
        %v837 = vunpack.c.l.b16 %v801
        %v838 = vunpack.c.l.b16 %v802
        %v839 = vunpack.c.l.b16 %v803
        %v840 = vpack.c.b16 %v825, %v824
        %v841 = vpack.c.b16 %v827, %v826
        %v842 = vpack.c.b16 %v829, %v828
        %v843 = vpack.c.b16 %v831, %v830
        %v844 = vpack.c.b16 %v833, %v832
        %v845 = vpack.c.b16 %v835, %v834
        %v846 = vpack.c.b16 %v837, %v836
        %v847 = vpack.c.b16 %v839, %v838
        %856 = vmatpush.bf16.msra.mxu0 %v847
        %857 = vmatpush.bf16.msra.mxu0 %v846
        %858 = vmatpush.bf16.msra.mxu0 %v845
        %859 = vmatpush.bf16.msra.mxu0 %v844
        %860 = vmatpush.bf16.msra.mxu0 %v843
        %861 = vmatpush.bf16.msra.mxu0 %v842
        %862 = vmatpush.bf16.msra.mxu0 %v841
        %863 = vmatpush.bf16.msra.mxu0 %v840
        %864 = vmatmul.bf16.gmra.mxu0 %v558
        %v865 = vpop.f32.mrf.mxu0
        %v866 = vadd.f32 %v806, %v865
        %v867 = vpop.f32.mrf.mxu0
        %v868 = vadd.f32 %v806, %v867
        %869 = vmatmul.bf16.gmra.mxu0 %v559
        %v870 = vpop.f32.mrf.mxu0
        %v871 = vadd.f32 %v806, %v870
        %v872 = vpop.f32.mrf.mxu0
        %v873 = vadd.f32 %v806, %v872
        %874 = vmatmul.bf16.gmra.mxu0 %v560
        %v875 = vpop.f32.mrf.mxu0
        %v876 = vadd.f32 %v806, %v875
        %v877 = vpop.f32.mrf.mxu0
        %v878 = vadd.f32 %v806, %v877
        %879 = vmatmul.bf16.gmra.mxu0 %v561
        %v880 = vpop.f32.mrf.mxu0
        %v881 = vadd.f32 %v806, %v880
        %v882 = vpop.f32.mrf.mxu0
        %v883 = vadd.f32 %v806, %v882
        %884 = vmatmul.bf16.gmra.mxu0 %v562
        %v885 = vpop.f32.mrf.mxu0
        %v886 = vadd.f32 %v806, %v885
        %v887 = vpop.f32.mrf.mxu0
        %v888 = vadd.f32 %v806, %v887
        %889 = vmatmul.bf16.gmra.mxu0 %v563
        %v890 = vpop.f32.mrf.mxu0
        %v891 = vadd.f32 %v806, %v890
        %v892 = vpop.f32.mrf.mxu0
        %v893 = vadd.f32 %v806, %v892
        %894 = vmatmul.bf16.gmra.mxu0 %v564
        %v895 = vpop.f32.mrf.mxu0
        %v896 = vadd.f32 %v806, %v895
        %v897 = vpop.f32.mrf.mxu0
        %v898 = vadd.f32 %v806, %v897
        %899 = vmatmul.bf16.gmra.mxu0 %v565
        %v900 = vpop.f32.mrf.mxu0
        %v901 = vadd.f32 %v806, %v900
        %v902 = vpop.f32.mrf.mxu0
        %v903 = vadd.f32 %v806, %v902
        %904 = vdwg.mxu0
        %v905 = vpack.c.bf16 %v634, %v632
        %v906 = vpack.c.bf16 %v639, %v637
        %v907 = vpack.c.bf16 %v644, %v642
        %v908 = vpack.c.bf16 %v649, %v647
        %v909 = vpack.c.bf16 %v654, %v652
        %v910 = vpack.c.bf16 %v659, %v657
        %v911 = vpack.c.bf16 %v664, %v662
        %v912 = vpack.c.bf16 %v669, %v667
        %v913 = vpack.c.bf16 %v751, %v749
        %v914 = vpack.c.bf16 %v756, %v754
        %v915 = vpack.c.bf16 %v761, %v759
        %v916 = vpack.c.bf16 %v766, %v764
        %v917 = vpack.c.bf16 %v771, %v769
        %v918 = vpack.c.bf16 %v776, %v774
        %v919 = vpack.c.bf16 %v781, %v779
        %v920 = vpack.c.bf16 %v786, %v784
        %vm921 = vcmask 261120
        %v923 = vsel %vm921, %v905, 0
        %v926 = vsel %vm921, %v906, 0
        %v929 = vsel %vm921, %v907, 0
        %v932 = vsel %vm921, %v908, 0
        %v935 = vsel %vm921, %v909, 0
        %v938 = vsel %vm921, %v910, 0
        %v941 = vsel %vm921, %v911, 0
        %v944 = vsel %vm921, %v912, 0
        %v947 = vsel %vm921, %v913, 0
        %v950 = vsel %vm921, %v914, 0
        %v953 = vsel %vm921, %v915, 0
        %v956 = vsel %vm921, %v916, 0
        %v959 = vsel %vm921, %v917, 0
        %v962 = vsel %vm921, %v918, 0
        %v965 = vsel %vm921, %v919, 0
        %v968 = vsel %vm921, %v920, 0
        %970 = vmatpush.bf16.xpose.msra.mxu0 %v968
        %971 = vmatpush.bf16.xpose.msra.mxu0 %v965
        %972 = vmatpush.bf16.xpose.msra.mxu0 %v962
        %973 = vmatpush.bf16.xpose.msra.mxu0 %v959
        %974 = vmatpush.bf16.xpose.msra.mxu0 %v956
        %975 = vmatpush.bf16.xpose.msra.mxu0 %v953
        %976 = vmatpush.bf16.xpose.msra.mxu0 %v950
        %977 = vmatpush.bf16.xpose.msra.mxu0 %v947
        %978 = vmatmul.bf16.gmra.mxu0 %v923
        %v979 = vpop.f32.mrf.mxu0
        %v980 = vadd.f32 0.0, %v979
        %v981 = vpop.f32.mrf.mxu0
        %v982 = vadd.f32 0.0, %v981
        %983 = vmatmul.bf16.gmra.mxu0 %v926
        %v984 = vpop.f32.mrf.mxu0
        %v985 = vadd.f32 0.0, %v984
        %v986 = vpop.f32.mrf.mxu0
        %v987 = vadd.f32 0.0, %v986
        %988 = vmatmul.bf16.gmra.mxu0 %v929
        %v989 = vpop.f32.mrf.mxu0
        %v990 = vadd.f32 0.0, %v989
        %v991 = vpop.f32.mrf.mxu0
        %v992 = vadd.f32 0.0, %v991
        %993 = vmatmul.bf16.gmra.mxu0 %v932
        %v994 = vpop.f32.mrf.mxu0
        %v995 = vadd.f32 0.0, %v994
        %v996 = vpop.f32.mrf.mxu0
        %v997 = vadd.f32 0.0, %v996
        %998 = vmatmul.bf16.gmra.mxu0 %v935
        %v999 = vpop.f32.mrf.mxu0
        %v1000 = vadd.f32 0.0, %v999
        %v1001 = vpop.f32.mrf.mxu0
        %v1002 = vadd.f32 0.0, %v1001
        %1003 = vmatmul.bf16.gmra.mxu0 %v938
        %v1004 = vpop.f32.mrf.mxu0
        %v1005 = vadd.f32 0.0, %v1004
        %v1006 = vpop.f32.mrf.mxu0
        %v1007 = vadd.f32 0.0, %v1006
        %1008 = vmatmul.bf16.gmra.mxu0 %v941
        %v1009 = vpop.f32.mrf.mxu0
        %v1010 = vadd.f32 0.0, %v1009
        %v1011 = vpop.f32.mrf.mxu0
        %v1012 = vadd.f32 0.0, %v1011
        %1013 = vmatmul.bf16.gmra.mxu0 %v944
        %v1014 = vpop.f32.mrf.mxu0
        %v1015 = vadd.f32 0.0, %v1014
        %v1016 = vpop.f32.mrf.mxu0
        %v1017 = vadd.f32 0.0, %v1016
        %1018 = vdwg.mxu0
        %v1019 = vmul.f32 %v980, 0.088388346
        %v1020 = vmul.f32 %v982, 0.088388346
        %v1021 = vmul.f32 %v985, 0.088388346
        %v1022 = vmul.f32 %v987, 0.088388346
        %v1023 = vmul.f32 %v990, 0.088388346
        %v1024 = vmul.f32 %v992, 0.088388346
        %v1025 = vmul.f32 %v995, 0.088388346
        %v1026 = vmul.f32 %v997, 0.088388346
        %v1027 = vmul.f32 %v1000, 0.088388346
        %v1028 = vmul.f32 %v1002, 0.088388346
        %v1029 = vmul.f32 %v1005, 0.088388346
        %v1030 = vmul.f32 %v1007, 0.088388346
        %v1031 = vmul.f32 %v1010, 0.088388346
        %v1032 = vmul.f32 %v1012, 0.088388346
        %v1033 = vmul.f32 %v1015, 0.088388346
        %v1034 = vmul.f32 %v1017, 0.088388346
        %1035 = vmax.xlane.f32.xlu0 %v1019
        %v1036 = vpop.xlane.xlu0 %1035
        %1037 = vmax.xlane.f32.xlu0 %v1020
        %v1038 = vpop.xlane.xlu0 %1037
        %1039 = vmax.xlane.f32.xlu0 %v1021
        %v1040 = vpop.xlane.xlu0 %1039
        %1041 = vmax.xlane.f32.xlu0 %v1022
        %v1042 = vpop.xlane.xlu0 %1041
        %1043 = vmax.xlane.f32.xlu0 %v1023
        %v1044 = vpop.xlane.xlu0 %1043
        %1045 = vmax.xlane.f32.xlu0 %v1024
        %v1046 = vpop.xlane.xlu0 %1045
        %1047 = vmax.xlane.f32.xlu0 %v1025
        %v1048 = vpop.xlane.xlu0 %1047
        %1049 = vmax.xlane.f32.xlu0 %v1026
        %v1050 = vpop.xlane.xlu0 %1049
        %1051 = vmax.xlane.f32.xlu0 %v1027
        %v1052 = vpop.xlane.xlu0 %1051
        %1053 = vmax.xlane.f32.xlu0 %v1028
        %v1054 = vpop.xlane.xlu0 %1053
        %1055 = vmax.xlane.f32.xlu0 %v1029
        %v1056 = vpop.xlane.xlu0 %1055
        %1057 = vmax.xlane.f32.xlu0 %v1030
        %v1058 = vpop.xlane.xlu0 %1057
        %1059 = vmax.xlane.f32.xlu0 %v1031
        %v1060 = vpop.xlane.xlu0 %1059
        %1061 = vmax.xlane.f32.xlu0 %v1032
        %v1062 = vpop.xlane.xlu0 %1061
        %1063 = vmax.xlane.f32.xlu0 %v1033
        %v1064 = vpop.xlane.xlu0 %1063
        %1065 = vmax.xlane.f32.xlu0 %v1034
        %v1066 = vpop.xlane.xlu0 %1065
        %v1067 = vsub.f32 %v1019, %v1036
        %v1068 = vsub.f32 %v1020, %v1038
        %v1069 = vsub.f32 %v1021, %v1040
        %v1070 = vsub.f32 %v1022, %v1042
        %v1071 = vsub.f32 %v1023, %v1044
        %v1072 = vsub.f32 %v1024, %v1046
        %v1073 = vsub.f32 %v1025, %v1048
        %v1074 = vsub.f32 %v1026, %v1050
        %v1075 = vsub.f32 %v1027, %v1052
        %v1076 = vsub.f32 %v1028, %v1054
        %v1077 = vsub.f32 %v1029, %v1056
        %v1078 = vsub.f32 %v1030, %v1058
        %v1079 = vsub.f32 %v1031, %v1060
        %v1080 = vsub.f32 %v1032, %v1062
        %v1081 = vsub.f32 %v1033, %v1064
        %v1082 = vsub.f32 %v1034, %v1066
        %v1083 = vmul.f32 %v1067, 1.442695
        %v1084 = vpow.pop %v1083
        %v1085 = vmul.f32 %v1068, 1.442695
        %v1086 = vpow.pop %v1085
        %v1087 = vmul.f32 %v1069, 1.442695
        %v1088 = vpow.pop %v1087
        %v1089 = vmul.f32 %v1070, 1.442695
        %v1090 = vpow.pop %v1089
        %v1091 = vmul.f32 %v1071, 1.442695
        %v1092 = vpow.pop %v1091
        %v1093 = vmul.f32 %v1072, 1.442695
        %v1094 = vpow.pop %v1093
        %v1095 = vmul.f32 %v1073, 1.442695
        %v1096 = vpow.pop %v1095
        %v1097 = vmul.f32 %v1074, 1.442695
        %v1098 = vpow.pop %v1097
        %v1099 = vmul.f32 %v1075, 1.442695
        %v1100 = vpow.pop %v1099
        %v1101 = vmul.f32 %v1076, 1.442695
        %v1102 = vpow.pop %v1101
        %v1103 = vmul.f32 %v1077, 1.442695
        %v1104 = vpow.pop %v1103
        %v1105 = vmul.f32 %v1078, 1.442695
        %v1106 = vpow.pop %v1105
        %v1107 = vmul.f32 %v1079, 1.442695
        %v1108 = vpow.pop %v1107
        %v1109 = vmul.f32 %v1080, 1.442695
        %v1110 = vpow.pop %v1109
        %v1111 = vmul.f32 %v1081, 1.442695
        %v1112 = vpow.pop %v1111
        %v1113 = vmul.f32 %v1082, 1.442695
        %v1114 = vpow.pop %v1113
        %1115 = vadd.xlane.f32.xlu0 %v1084
        %v1116 = vpop.xlane.xlu0 %1115
        %1117 = vadd.xlane.f32.xlu0 %v1086
        %v1118 = vpop.xlane.xlu0 %1117
        %1119 = vadd.xlane.f32.xlu0 %v1088
        %v1120 = vpop.xlane.xlu0 %1119
        %1121 = vadd.xlane.f32.xlu0 %v1090
        %v1122 = vpop.xlane.xlu0 %1121
        %1123 = vadd.xlane.f32.xlu0 %v1092
        %v1124 = vpop.xlane.xlu0 %1123
        %1125 = vadd.xlane.f32.xlu0 %v1094
        %v1126 = vpop.xlane.xlu0 %1125
        %1127 = vadd.xlane.f32.xlu0 %v1096
        %v1128 = vpop.xlane.xlu0 %1127
        %1129 = vadd.xlane.f32.xlu0 %v1098
        %v1130 = vpop.xlane.xlu0 %1129
        %1131 = vadd.xlane.f32.xlu0 %v1100
        %v1132 = vpop.xlane.xlu0 %1131
        %1133 = vadd.xlane.f32.xlu0 %v1102
        %v1134 = vpop.xlane.xlu0 %1133
        %1135 = vadd.xlane.f32.xlu0 %v1104
        %v1136 = vpop.xlane.xlu0 %1135
        %1137 = vadd.xlane.f32.xlu0 %v1106
        %v1138 = vpop.xlane.xlu0 %1137
        %1139 = vadd.xlane.f32.xlu0 %v1108
        %v1140 = vpop.xlane.xlu0 %1139
        %1141 = vadd.xlane.f32.xlu0 %v1110
        %v1142 = vpop.xlane.xlu0 %1141
        %1143 = vadd.xlane.f32.xlu0 %v1112
        %v1144 = vpop.xlane.xlu0 %1143
        %1145 = vadd.xlane.f32.xlu0 %v1114
        %v1146 = vpop.xlane.xlu0 %1145
        %v1147 = vrcp.pop %v1116
        %v1148 = vrcp.pop %v1118
        %v1149 = vrcp.pop %v1120
        %v1150 = vrcp.pop %v1122
        %v1151 = vrcp.pop %v1124
        %v1152 = vrcp.pop %v1126
        %v1153 = vrcp.pop %v1128
        %v1154 = vrcp.pop %v1130
        %v1155 = vrcp.pop %v1132
        %v1156 = vrcp.pop %v1134
        %v1157 = vrcp.pop %v1136
        %v1158 = vrcp.pop %v1138
        %v1159 = vrcp.pop %v1140
        %v1160 = vrcp.pop %v1142
        %v1161 = vrcp.pop %v1144
        %v1162 = vrcp.pop %v1146
        %v1163 = vmul.f32 %v1084, %v1147
        %v1164 = vmul.f32 %v1086, %v1148
        %v1165 = vmul.f32 %v1088, %v1149
        %v1166 = vmul.f32 %v1090, %v1150
        %v1167 = vmul.f32 %v1092, %v1151
        %v1168 = vmul.f32 %v1094, %v1152
        %v1169 = vmul.f32 %v1096, %v1153
        %v1170 = vmul.f32 %v1098, %v1154
        %v1171 = vmul.f32 %v1100, %v1155
        %v1172 = vmul.f32 %v1102, %v1156
        %v1173 = vmul.f32 %v1104, %v1157
        %v1174 = vmul.f32 %v1106, %v1158
        %v1175 = vmul.f32 %v1108, %v1159
        %v1176 = vmul.f32 %v1110, %v1160
        %v1177 = vmul.f32 %v1112, %v1161
        %v1178 = vmul.f32 %v1114, %v1162
        %v1179 = vld [vmem:[%s456] sm:$0xff]
        %v1180 = vld [vmem:[%s456 + $0x8] sm:$0xff]
        %v1181 = vld [vmem:[%s456 + $0x10] sm:$0xff]
        %v1182 = vld [vmem:[%s456 + $0x18] sm:$0xff]
        %v1183 = vld [vmem:[%s456 + $0x20] sm:$0xff]
        %v1184 = vld [vmem:[%s456 + $0x28] sm:$0xff]
        %v1185 = vld [vmem:[%s456 + $0x30] sm:$0xff]
        %v1186 = vld [vmem:[%s456 + $0x38] sm:$0xff]
        %v1187 = vld [vmem:[%s456 + $0x40] sm:$0xff]
        %v1188 = vld [vmem:[%s456 + $0x48] sm:$0xff]
        %v1189 = vld [vmem:[%s456 + $0x50] sm:$0xff]
        %v1190 = vld [vmem:[%s456 + $0x58] sm:$0xff]
        %v1191 = vld [vmem:[%s456 + $0x60] sm:$0xff]
        %v1192 = vld [vmem:[%s456 + $0x68] sm:$0xff]
        %v1193 = vld [vmem:[%s456 + $0x70] sm:$0xff]
        %v1194 = vld [vmem:[%s456 + $0x78] sm:$0xff]
        %vm1195 = vcmp.eq.f32.partialorder %v1179, 0.0
        %vm1196 = vcmp.eq.f32.partialorder %v1180, 0.0
        %vm1197 = vcmp.eq.f32.partialorder %v1181, 0.0
        %vm1198 = vcmp.eq.f32.partialorder %v1182, 0.0
        %vm1199 = vcmp.eq.f32.partialorder %v1183, 0.0
        %vm1200 = vcmp.eq.f32.partialorder %v1184, 0.0
        %vm1201 = vcmp.eq.f32.partialorder %v1185, 0.0
        %vm1202 = vcmp.eq.f32.partialorder %v1186, 0.0
        %vm1203 = vcmp.eq.f32.partialorder %v1187, 0.0
        %vm1204 = vcmp.eq.f32.partialorder %v1188, 0.0
        %vm1205 = vcmp.eq.f32.partialorder %v1189, 0.0
        %vm1206 = vcmp.eq.f32.partialorder %v1190, 0.0
        %vm1207 = vcmp.eq.f32.partialorder %v1191, 0.0
        %vm1208 = vcmp.eq.f32.partialorder %v1192, 0.0
        %vm1209 = vcmp.eq.f32.partialorder %v1193, 0.0
        %vm1210 = vcmp.eq.f32.partialorder %v1194, 0.0
        %v1211 = vsel %vm1195, 1e-09, %v1163
        %v1212 = vsel %vm1196, 1e-09, %v1164
        %v1213 = vsel %vm1197, 1e-09, %v1165
        %v1214 = vsel %vm1198, 1e-09, %v1166
        %v1215 = vsel %vm1199, 1e-09, %v1167
        %v1216 = vsel %vm1200, 1e-09, %v1168
        %v1217 = vsel %vm1201, 1e-09, %v1169
        %v1218 = vsel %vm1202, 1e-09, %v1170
        %v1219 = vsel %vm1203, 1e-09, %v1171
        %v1220 = vsel %vm1204, 1e-09, %v1172
        %v1221 = vsel %vm1205, 1e-09, %v1173
        %v1222 = vsel %vm1206, 1e-09, %v1174
        %v1223 = vsel %vm1207, 1e-09, %v1175
        %v1224 = vsel %vm1208, 1e-09, %v1176
        %v1225 = vsel %vm1209, 1e-09, %v1177
        %v1226 = vsel %vm1210, 1e-09, %v1178
        %1227 = vst [vmem:[%s446] sm:$0xff] %v1211
        %1228 = vst [vmem:[%s446 + $0x8] sm:$0xff] %v1212
        %1229 = vst [vmem:[%s446 + $0x10] sm:$0xff] %v1213
        %1230 = vst [vmem:[%s446 + $0x18] sm:$0xff] %v1214
        %1231 = vst [vmem:[%s446 + $0x20] sm:$0xff] %v1215
        %1232 = vst [vmem:[%s446 + $0x28] sm:$0xff] %v1216
        %1233 = vst [vmem:[%s446 + $0x30] sm:$0xff] %v1217
        %1234 = vst [vmem:[%s446 + $0x38] sm:$0xff] %v1218
        %1235 = vst [vmem:[%s446 + $0x40] sm:$0xff] %v1219
        %1236 = vst [vmem:[%s446 + $0x48] sm:$0xff] %v1220
        %1237 = vst [vmem:[%s446 + $0x50] sm:$0xff] %v1221
        %1238 = vst [vmem:[%s446 + $0x58] sm:$0xff] %v1222
        %1239 = vst [vmem:[%s446 + $0x60] sm:$0xff] %v1223
        %1240 = vst [vmem:[%s446 + $0x68] sm:$0xff] %v1224
        %1241 = vst [vmem:[%s446 + $0x70] sm:$0xff] %v1225
        %1242 = vst [vmem:[%s446 + $0x78] sm:$0xff] %v1226
        %v1243 = vpack.c.bf16 %v1212, %v1211
        %v1244 = vpack.c.bf16 %v1214, %v1213
        %v1245 = vpack.c.bf16 %v1216, %v1215
        %v1246 = vpack.c.bf16 %v1218, %v1217
        %v1247 = vpack.c.bf16 %v1220, %v1219
        %v1248 = vpack.c.bf16 %v1222, %v1221
        %v1249 = vpack.c.bf16 %v1224, %v1223
        %v1250 = vpack.c.bf16 %v1226, %v1225
        %v1251 = vpack.c.bf16 %v868, %v866
        %v1252 = vpack.c.bf16 %v873, %v871
        %v1253 = vpack.c.bf16 %v878, %v876
        %v1254 = vpack.c.bf16 %v883, %v881
        %v1255 = vpack.c.bf16 %v888, %v886
        %v1256 = vpack.c.bf16 %v893, %v891
        %v1257 = vpack.c.bf16 %v898, %v896
        %v1258 = vpack.c.bf16 %v903, %v901
        %1259 = vmatpush.bf16.msra.mxu0 %v1258
        %1260 = vmatpush.bf16.msra.mxu0 %v1257
        %1261 = vmatpush.bf16.msra.mxu0 %v1256
        %1262 = vmatpush.bf16.msra.mxu0 %v1255
        %1263 = vmatpush.bf16.msra.mxu0 %v1254
        %1264 = vmatpush.bf16.msra.mxu0 %v1253
        %1265 = vmatpush.bf16.msra.mxu0 %v1252
        %1266 = vmatpush.bf16.msra.mxu0 %v1251
        %1267 = vmatmul.bf16.gmra.mxu0 %v1243
        %v1268 = vpop.f32.mrf.mxu0
        %v1269 = vadd.f32 0.0, %v1268
        %v1270 = vpop.f32.mrf.mxu0
        %v1271 = vadd.f32 0.0, %v1270
        %1272 = vmatmul.bf16.gmra.mxu0 %v1244
        %v1273 = vpop.f32.mrf.mxu0
        %v1274 = vadd.f32 0.0, %v1273
        %v1275 = vpop.f32.mrf.mxu0
        %v1276 = vadd.f32 0.0, %v1275
        %1277 = vmatmul.bf16.gmra.mxu0 %v1245
        %v1278 = vpop.f32.mrf.mxu0
        %v1279 = vadd.f32 0.0, %v1278
        %v1280 = vpop.f32.mrf.mxu0
        %v1281 = vadd.f32 0.0, %v1280
        %1282 = vmatmul.bf16.gmra.mxu0 %v1246
        %v1283 = vpop.f32.mrf.mxu0
        %v1284 = vadd.f32 0.0, %v1283
        %v1285 = vpop.f32.mrf.mxu0
        %v1286 = vadd.f32 0.0, %v1285
        %1287 = vmatmul.bf16.gmra.mxu0 %v1247
        %v1288 = vpop.f32.mrf.mxu0
        %v1289 = vadd.f32 0.0, %v1288
        %v1290 = vpop.f32.mrf.mxu0
        %v1291 = vadd.f32 0.0, %v1290
        %1292 = vmatmul.bf16.gmra.mxu0 %v1248
        %v1293 = vpop.f32.mrf.mxu0
        %v1294 = vadd.f32 0.0, %v1293
        %v1295 = vpop.f32.mrf.mxu0
        %v1296 = vadd.f32 0.0, %v1295
        %1297 = vmatmul.bf16.gmra.mxu0 %v1249
        %v1298 = vpop.f32.mrf.mxu0
        %v1299 = vadd.f32 0.0, %v1298
        %v1300 = vpop.f32.mrf.mxu0
        %v1301 = vadd.f32 0.0, %v1300
        %1302 = vmatmul.bf16.gmra.mxu0 %v1250
        %v1303 = vpop.f32.mrf.mxu0
        %v1304 = vadd.f32 0.0, %v1303
        %v1305 = vpop.f32.mrf.mxu0
        %v1306 = vadd.f32 0.0, %v1305
        %1307 = vdwg.mxu0
        %1308 = vst.msk [vmem:[%s489] sm:$0xff] %vm921, %v1269
        %1309 = vst.msk [vmem:[%s489 + $0x8] sm:$0xff] %vm921, %v1271
        %1310 = vst.msk [vmem:[%s489 + $0x10] sm:$0xff] %vm921, %v1274
        %1311 = vst.msk [vmem:[%s489 + $0x18] sm:$0xff] %vm921, %v1276
        %1312 = vst.msk [vmem:[%s489 + $0x20] sm:$0xff] %vm921, %v1279
        %1313 = vst.msk [vmem:[%s489 + $0x28] sm:$0xff] %vm921, %v1281
        %1314 = vst.msk [vmem:[%s489 + $0x30] sm:$0xff] %vm921, %v1284
        %1315 = vst.msk [vmem:[%s489 + $0x38] sm:$0xff] %vm921, %v1286
        %1316 = vst.msk [vmem:[%s489 + $0x40] sm:$0xff] %vm921, %v1289
        %1317 = vst.msk [vmem:[%s489 + $0x48] sm:$0xff] %vm921, %v1291
        %1318 = vst.msk [vmem:[%s489 + $0x50] sm:$0xff] %vm921, %v1294
        %1319 = vst.msk [vmem:[%s489 + $0x58] sm:$0xff] %vm921, %v1296
        %1320 = vst.msk [vmem:[%s489 + $0x60] sm:$0xff] %vm921, %v1299
        %1321 = vst.msk [vmem:[%s489 + $0x68] sm:$0xff] %vm921, %v1301
        %1322 = vst.msk [vmem:[%s489 + $0x70] sm:$0xff] %vm921, %v1304
        %1323 = vst.msk [vmem:[%s489 + $0x78] sm:$0xff] %vm921, %v1306
        %p1324 = scmp.lt.s32.totalorder %s28, 1
        %s1325 = scalar_select %p1324, %s28, 1
        %p1326 = scmp.lt.s32.totalorder %s29, 3
        %s1327 = scalar_select %p1326, %s29, 3
        %s1328 = smul.addr %s1327, 16
        %s1329 = smul.addr %s1325, 64
        %s1330 = sadd.s32 %s1328, %s1329
        %s1331 = smul.addr %s1330, 8
        %s1332 = scalar_lea.vmem %s8, %s1331
        %s1333 = sand.u32 %s282, 1
        %s1334 = scalar_lea.sflag [#allocation3], %s1333
        %s1335 = sand.u32 %s282, 1
        %s1336 = smul.addr %s1335, 128
        %s1337 = scalar_lea.vmem [#allocation2], %s1336
        // Predicated region
        $region53: #{tpu_custom_call.1} parent=51 // pred_check
          %p1338 = pneg %p264
        $region54: #{tpu_custom_call.1} parent=51 // pred_check_branch
          %1340 = sbr.rel (%p1338) target = $region56
        $region55: #{tpu_custom_call.1} parent=51 // pred_region
          _
        $region56: #{tpu_custom_call.1} parent=51 // pred_fallthru
          _
        // Predicated region
        $region57: #{tpu_custom_call.1} parent=51 // pred_check
          %p1341 = pneg %p292
        $region58: #{tpu_custom_call.1} parent=51 // pred_check_branch
          %1343 = sbr.rel (%p1341) target = $region60
        $region59: #{tpu_custom_call.1} parent=51 // pred_region
          %1345 = vsyncadd %s1334, 0
          %s1346 = smul.addr %s29, 16
          %s1347 = smul.addr %s28, 64
          %s1348 = sadd.s32 %s1346, %s1347
          %s1349 = smul.addr %s1348, 8
          %s1350 = scalar_lea.hbm %s9, %s1349
          %s1351 = sshll.u32 %s1337, 4
          %s1352 = int_to_ptr.vmem [resolvable:$true] %s1351
          %s1353 = sshll.u32 %s1350, 4
          %s1354 = int_to_ptr.hbm [resolvable:$true] %s1353
          %1359 = dma.vmem_to_hbm [thread:$0]  %s1352, 2048, %s1354, %s1334, 128, 128, 8
        $region60: #{tpu_custom_call.1} parent=51 // pred_fallthru
          _
      $region52: #{tpu_custom_call.1} parent=5 // pred_fallthru
        _
      %p1360 = scmp.le.s32.totalorder 2, %s19
      // Predicated region
      $region61: #{tpu_custom_call.1} parent=5 // pred_check
        %p1361 = pneg %p1360
      $region62: #{tpu_custom_call.1} parent=5 // pred_check_branch
        %1363 = sbr.rel (%p1361) target = $region64
      $region63: #{tpu_custom_call.1} parent=5 // pred_region
        %s1364 = ssub.s32 %s19, 2
        // Predicated region
        $region65: #{tpu_custom_call.1} parent=63 // pred_check
          %p1365 = pneg %p270
        $region66: #{tpu_custom_call.1} parent=63 // pred_check_branch
          %1367 = sbr.rel (%p1365) target = $region68
        $region67: #{tpu_custom_call.1} parent=63 // pred_region
          %p1368 = scmp.lt.s32.totalorder %s30, 1
          %s1369 = scalar_select %p1368, %s30, 1
          %p1370 = scmp.lt.s32.totalorder %s31, 3
          %s1371 = scalar_select %p1370, %s31, 3
          %s1372 = smul.addr %s1371, 16
          %s1373 = smul.addr %s1369, 64
          %s1374 = sadd.s32 %s1372, %s1373
          %s1375 = smul.addr %s1374, 8
          %s1376 = scalar_lea.vmem %s8, %s1375
        $region68: #{tpu_custom_call.1} parent=63 // pred_fallthru
          _
        // Predicated region
        $region69: #{tpu_custom_call.1} parent=63 // pred_check
          %p1377 = pneg %p298
        $region70: #{tpu_custom_call.1} parent=63 // pred_check_branch
          %1379 = sbr.rel (%p1377) target = $region72
        $region71: #{tpu_custom_call.1} parent=63 // pred_region
          %s1380 = sand.u32 %s283, 1
          %s1381 = scalar_lea.sflag [#allocation3], %s1380
          %s1382 = sand.u32 %s283, 1
          %s1383 = smul.addr %s1382, 128
          %s1384 = scalar_lea.vmem [#allocation2], %s1383
          %1386 = dma.done %s1381, 2048
        $region72: #{tpu_custom_call.1} parent=63 // pred_fallthru
          _
      $region64: #{tpu_custom_call.1} parent=5 // pred_fallthru
        _
    $region6: #{tpu_custom_call.1} parent=1 // loop_footer
      %s23 = sadd.s32 1, %s19
    $region7: #{tpu_custom_call.1} parent=1 // loop_footer_branch
      %18 = sbr.rel target = $region3
    $region8: #{tpu_custom_call.1} parent=1 // loop_exit
      _
    %1387 = vsyncpa [#allocation3], 1
    %s1388 = scalar_lea.sflag [#allocation3], 1
    %1389 = vsyncpa %s1388, 1

</llo_original>
